<compile_context>
chip_gen: v5e
topology: v5e:2x2
jax: 0.10.0
libtpu: 0.0.40
codegen_flags: <defaults>
</compile_context>

<pallas_src>
import math

import jax
import jax.numpy as jnp
from jax.experimental import pallas as pl
from jax.experimental.pallas import tpu as pltpu


_SQRT_2_OVER_PI = math.sqrt(2.0 / math.pi)


def _gelu_tanh(x):
    # TODO(synk): PyTorch nn.GELU() default is the exact erf formulation; the tanh
    # approximation is used for guaranteed Mosaic/EUP lowering (tiny deviation).
    return 0.5 * x * (1.0 + jnp.tanh(_SQRT_2_OVER_PI * (x + 0.044715 * x * x * x)))


# ---- in-kernel spatial shifts -------------------------------------------------------
# Functional (edge-replicating) form of the PyTorch in-place slice assignments.
# Shift kinds and the per-quarter orders used by spatial_shift1 / spatial_shift2.
_WP, _WM, _HP, _HM = 0, 1, 2, 3
_SHIFT1_ORDER = (_WP, _WM, _HP, _HM)   # quarters 0..3 of spatial_shift1
_SHIFT2_ORDER = (_HP, _HM, _WP, _WM)   # quarters 0..3 of spatial_shift2


def _shift_one(t, kind, h_first=None, h_last=None):
    """Edge-replicated +/-1 shift of a (W, H, C) tile along W (major) or H (sublane)."""
    _, Ht, Ct = t.shape
    if kind == _WP:    # out[w] = in[w-1]; row 0 unchanged  (whole-vreg copies)
        return jnp.concatenate([t[:1], t[:-1]], axis=0)
    if kind == _WM:    # out[w] = in[w+1]; last row unchanged
        return jnp.concatenate([t[1:], t[-1:]], axis=0)
    # H is the sublane axis: XLU rotate + a single boundary-row select keeps the
    # VALU / vector-store slots free (vs. masked sublane concat copies).
    if h_first is None or h_last is None:
        hrow = jax.lax.broadcasted_iota(jnp.int32, (1, Ht, Ct), 1)
        h_first = hrow == 0
        h_last = hrow == Ht - 1
    if kind == _HP:    # out[h] = in[h-1]; row 0 unchanged
        return jnp.where(h_first, t, pltpu.roll(t, 1, axis=1))
    # _HM: out[h] = in[h+1]; last row unchanged (roll by H-1 == roll by -1)
    return jnp.where(h_last, t, pltpu.roll(t, Ht - 1, axis=1))


def _shift_select(t, order, m0, m01, m012, h_first, h_last):
    """Full-width shifted copies + hoisted lane-quarter selects (for C//4 < 128 lanes)."""
    cp = [_shift_one(t, k, h_first, h_last) for k in (_WP, _WM, _HP, _HM)]
    a, b, c, d = (cp[k] for k in order)
    return jnp.where(m0, a, jnp.where(m01, b, jnp.where(m012, c, d)))


def _shift_quarters(t, order):
    """Shift each lane-aligned channel quarter directly (C//4 % 128 == 0): no selects."""
    q = t.shape[-1] // 4
    return jnp.concatenate(
        [_shift_one(t[:, :, i * q:(i + 1) * q], k) for i, k in enumerate(order)],
        axis=-1)


# ---- Pallas kernel ------------------------------------------------------------------

def _s2_attention_kernel(x_ref, w1t_ref, b1_ref, wat_ref, wbt_ref, w2t_ref,
                         b2_ref, o_ref):
    _, W, H, C = x_ref.shape
    WH = W * H

    xb = x_ref[0]                                            # (W, H, C) f32

    # mlp1: Linear(C -> 3C). bf16 operands, f32 accumulate on the MXU.
    y = jnp.dot(xb.reshape(WH, C).astype(jnp.bfloat16), w1t_ref[...],
                preferred_element_type=jnp.float32) + b1_ref[...]        # (WH, 3C) f32
    y = y.reshape(W, H, 3 * C)

    y1 = y[:, :, :C]
    y2 = y[:, :, C:2 * C]
    x3 = y[:, :, 2 * C:].reshape(WH, C)

    if (C // 4) % 128 == 0:
        # Lane-aligned quarters (C >= 512): shift each quarter once, no iota / select.
        x1 = _shift_quarters(y1, _SHIFT1_ORDER).reshape(WH, C)
        x2 = _shift_quarters(y2, _SHIFT2_ORDER).reshape(WH, C)
    else:
        # Sub-128-lane quarters (e.g. C=128/256): shifted full-width copies + lane-quarter
        # selects with masks hoisted once and reused by both shift1 and shift2.
        q = C // 4
        lane = jax.lax.broadcasted_iota(jnp.int32, (1, H, C), 2)
        m0, m01, m012 = lane < q, lane < 2 * q, lane < 3 * q
        hrow = jax.lax.broadcasted_iota(jnp.int32, (1, H, C), 1)
        h_first, h_last = hrow == 0, hrow == H - 1
        x1 = _shift_select(y1, _SHIFT1_ORDER, m0, m01, m012, h_first, h_last).reshape(WH, C)
        x2 = _shift_select(y2, _SHIFT2_ORDER, m0, m01, m012, h_first, h_last).reshape(WH, C)

    # --- SplitAttention (k = 3) --- (M=1 matmuls: tiny, kept in f32; measure-first item)
    a = jnp.sum(x1 + x2 + x3, axis=0, keepdims=True)         # (1, C) pooled descriptor

    h1 = _gelu_tanh(jnp.dot(a, wat_ref[...],
                            preferred_element_type=jnp.float32))         # (1, C)
    hat = jnp.dot(h1, wbt_ref[...],
                  preferred_element_type=jnp.float32)                    # (1, 3C)

    l0 = hat[:, :C]
    l1 = hat[:, C:2 * C]
    l2 = hat[:, 2 * C:]
    m = jnp.maximum(jnp.maximum(l0, l1), l2)                 # stable softmax over k
    e0 = jnp.exp(l0 - m)
    e1 = jnp.exp(l1 - m)
    e2 = jnp.exp(l2 - m)
    inv = pl.reciprocal(e0 + e1 + e2, approx=True)           # EUP slot, ~2^-12 rel error
    a0 = e0 * inv
    a1 = e1 * inv
    a2 = e2 * inv                                            # (1, C) each

    out_feat = a0 * x1 + a1 * x2 + a2 * x3                   # (WH, C) f32

    # mlp2: Linear(C -> C). bf16 operands, f32 accumulate.
    z = jnp.dot(out_feat.astype(jnp.bfloat16), w2t_ref[...],
                preferred_element_type=jnp.float32) + b2_ref[...]        # (WH, C)
    o_ref[0] = z.reshape(W, H, C)


def _s2_attention_pallas(x_bwhc, w1t, b1, wat, wbt, w2t, b2):
    B, W, H, C = x_bwhc.shape
    WH = W * H

    flops = (2 * B * WH * C * (3 * C)            # mlp1
             + 2 * B * WH * C * C                # mlp2
             + 2 * B * (C * C + C * 3 * C))      # SplitAttention mlps
    bytes_accessed = ((x_bwhc.size + B * WH * C) * 4
                      + (w1t.size + w2t.size) * 2
                      + (wat.size + wbt.size + b1.size + b2.size) * 4)
    cost = pl.CostEstimate(flops=int(flops),
                           transcendentals=int(5 * B * C),
                           bytes_accessed=int(bytes_accessed))

    # NOTE: weight/bias specs are resident (constant index_map); at large C consider
    # pipeline_mode=pl.Buffered(1) on them to drop the second pipeline buffer.
    return pl.pallas_call(
        _s2_attention_kernel,
        out_shape=jax.ShapeDtypeStruct((B, W, H, C), jnp.float32),
        grid_spec=pltpu.PrefetchScalarGridSpec(
            num_scalar_prefetch=0,
            grid=(B,),
            in_specs=[
                pl.BlockSpec((1, W, H, C), lambda b: (b, 0, 0, 0)),  # x (per-batch tile)
                pl.BlockSpec((C, 3 * C), lambda b: (0, 0)),          # mlp1 w^T (bf16)
                pl.BlockSpec((1, 3 * C), lambda b: (0, 0)),          # mlp1 bias
                pl.BlockSpec((C, C), lambda b: (0, 0)),              # SA mlp1 w^T (f32)
                pl.BlockSpec((C, 3 * C), lambda b: (0, 0)),          # SA mlp2 w^T (f32)
                pl.BlockSpec((C, C), lambda b: (0, 0)),              # mlp2 w^T (bf16)
                pl.BlockSpec((1, C), lambda b: (0, 0)),              # mlp2 bias
            ],
            out_specs=pl.BlockSpec((1, W, H, C), lambda b: (b, 0, 0, 0)),
        ),
        compiler_params=pltpu.CompilerParams(
            dimension_semantics=("parallel",),        # batch axis shards across TCs
            vmem_limit_bytes=48 * 1024 * 1024,        # headroom below v7x's 64 MiB VMEM
        ),
        cost_estimate=cost,
    )(x_bwhc, w1t, b1, wat, wbt, w2t, b2)


@jax.jit
def s2_attention_nhwc(x_bwhc, params):
    """Preferred channel-last entry point: x is (B, W, H, C), no layout transposes."""
    C = x_bwhc.shape[-1]
    # Pre-transpose weights so every in-kernel matmul is (rows, C) @ (C, out): lane-dense.
    # mlp1 / mlp2 weights are cast to bf16 (f32 accumulation happens on the MXU).
    w1t = params["mlp1_w"].T.astype(jnp.bfloat16)            # (C, 3C)
    b1 = params["mlp1_b"].reshape(1, 3 * C).astype(jnp.float32)
    wat = params["sa_mlp1_w"].T.astype(jnp.float32)          # (C, C)   no bias
    wbt = params["sa_mlp2_w"].T.astype(jnp.float32)          # (C, 3C)  no bias
    w2t = params["mlp2_w"].T.astype(jnp.bfloat16)            # (C, C)
    b2 = params["mlp2_b"].reshape(1, C).astype(jnp.float32)
    return _s2_attention_pallas(x_bwhc.astype(jnp.float32), w1t, b1, wat, wbt, w2t, b2)


@jax.jit
def s2_attention(x_nchw, params):
    """NCHW wrapper matching the PyTorch module interface.

    x_nchw: (B, C, W, H) f32. params: PyTorch-layout (out_features, in_features) weights.
    NOTE: the two transposes below are full HBM round trips; keep the surrounding model
    channel-last and call s2_attention_nhwc directly when possible.
    """
    B, C, W, H = x_nchw.shape
    assert C % 4 == 0, "channels must be divisible by 4 for the spatial shifts"
    x_bwhc = jnp.transpose(x_nchw, (0, 2, 3, 1))             # (B, W, H, C)
    out_bwhc = s2_attention_nhwc(x_bwhc, params)
    return jnp.transpose(out_bwhc, (0, 3, 1, 2))             # back to (B, C, W, H)


# ---- pure-JAX reference (independent concat-based shifts, f32 HIGHEST precision) -----

def _ref_spatial_shift1(t):
    c = t.shape[-1]
    q = c // 4
    return jnp.concatenate([
        jnp.concatenate([t[:, :1, :, :q], t[:, :-1, :, :q]], axis=1),              # w+
        jnp.concatenate([t[:, 1:, :, q:2 * q], t[:, -1:, :, q:2 * q]], axis=1),    # w-
        jnp.concatenate([t[:, :, :1, 2 * q:3 * q], t[:, :, :-1, 2 * q:3 * q]], axis=2),  # h+
        jnp.concatenate([t[:, :, 1:, 3 * q:], t[:, :, -1:, 3 * q:]], axis=2),      # h-
    ], axis=-1)


def _ref_spatial_shift2(t):
    c = t.shape[-1]
    q = c // 4
    return jnp.concatenate([
        jnp.concatenate([t[:, :, :1, :q], t[:, :, :-1, :q]], axis=2),              # h+
        jnp.concatenate([t[:, :, 1:, q:2 * q], t[:, :, -1:, q:2 * q]], axis=2),    # h-
        jnp.concatenate([t[:, :1, :, 2 * q:3 * q], t[:, :-1, :, 2 * q:3 * q]], axis=1),  # w+
        jnp.concatenate([t[:, 1:, :, 3 * q:], t[:, -1:, :, 3 * q:]], axis=1),      # w-
    ], axis=-1)


def _reference(x_nchw, params):
    B, C, W, H = x_nchw.shape
    hp = jax.lax.Precision.HIGHEST
    x = jnp.transpose(x_nchw, (0, 2, 3, 1))                               # (B, W, H, C)
    y = jnp.matmul(x, params["mlp1_w"].T, precision=hp) + params["mlp1_b"]
    x1 = _ref_spatial_shift1(y[..., :C])
    x2 = _ref_spatial_shift2(y[..., C:2 * C])
    x3 = y[..., 2 * C:]
    a = jnp.sum(x1 + x2 + x3, axis=(1, 2))                                # (B, C)
    h1 = _gelu_tanh(jnp.matmul(a, params["sa_mlp1_w"].T, precision=hp))
    hat = jnp.matmul(h1, params["sa_mlp2_w"].T, precision=hp)             # (B, 3C)
    bar = jax.nn.softmax(hat.reshape(B, 3, C), axis=1)                    # (B, 3, C)
    out = (bar[:, 0][:, None, None, :] * x1
           + bar[:, 1][:, None, None, :] * x2
           + bar[:, 2][:, None, None, :] * x3)                            # (B, W, H, C)
    z = jnp.matmul(out, params["mlp2_w"].T, precision=hp) + params["mlp2_b"]
    return jnp.transpose(z, (0, 3, 1, 2))


if __name__ == "__main__":
    # Small shapes consistent with the module; C=128 keeps the lane dim dense and C%4==0.
    B, C, W, H = 2, 128, 16, 16

    key = jax.random.PRNGKey(0)
    ks = jax.random.split(key, 7)
    scale = 0.05

    x = jax.random.normal(ks[0], (B, C, W, H), dtype=jnp.float32)
    params = {
        # PyTorch nn.Linear layout: weight is (out_features, in_features).
        "mlp1_w": jax.random.normal(ks[1], (3 * C, C), dtype=jnp.float32) * scale,
        "mlp1_b": jax.random.normal(ks[2], (3 * C,), dtype=jnp.float32) * scale,
        "sa_mlp1_w": jax.random.normal(ks[3], (C, C), dtype=jnp.float32) * scale,
        "sa_mlp2_w": jax.random.normal(ks[4], (3 * C, C), dtype=jnp.float32) * scale,
        "mlp2_w": jax.random.normal(ks[5], (C, C), dtype=jnp.float32) * scale,
        "mlp2_b": jax.random.normal(ks[6], (C,), dtype=jnp.float32) * scale,
    }

    out = jax.block_until_ready(s2_attention(x, params))
    assert out.shape == (B, C, W, H)

    ref = jax.block_until_ready(_reference(x, params))
    max_err = float(jnp.max(jnp.abs(out - ref)))
    # Tolerance accounts for bf16 matmul operands (f32 accumulate) vs. the f32
    # HIGHEST-precision reference; a shift-direction or mask error would be O(0.1+).
    assert jnp.allclose(out, ref, atol=5e-2, rtol=5e-2), (
        "max abs diff = %g" % max_err)

    print("KERNEL_OK")
</pallas_src>

<mosaic_0001>
module attributes {stable_mosaic.version = 11 : i64} {
  func.func @_s2_attention_kernel(%arg0: i32, %arg1: memref<1x16x16x128xf32, #tpu.memory_space<vmem>>, %arg2: memref<128x384xbf16, #tpu.memory_space<vmem>>, %arg3: memref<1x384xf32, #tpu.memory_space<vmem>>, %arg4: memref<128x128xf32, #tpu.memory_space<vmem>>, %arg5: memref<128x384xf32, #tpu.memory_space<vmem>>, %arg6: memref<128x128xbf16, #tpu.memory_space<vmem>>, %arg7: memref<1x128xf32, #tpu.memory_space<vmem>>, %arg8: memref<1x16x16x128xf32, #tpu.memory_space<vmem>>) attributes {dimension_semantics = [#tpu.dimension_semantics<parallel>], iteration_bounds = array<i64: 2>, scalar_prefetch = 0 : i64, scratch_operands = 0 : i64, tpu.core_type = #tpu.core_type<tc>, window_params = [{transform_indices = @transform_0, window_bounds = array<i64: 1, 16, 16, 128>}, {pipeline_mode = #tpu.pipeline_mode<synchronous>, transform_indices = @transform_1, window_bounds = array<i64: 128, 384>}, {pipeline_mode = #tpu.pipeline_mode<synchronous>, transform_indices = @transform_2, window_bounds = array<i64: 1, 384>}, {pipeline_mode = #tpu.pipeline_mode<synchronous>, transform_indices = @transform_3, window_bounds = array<i64: 128, 128>}, {pipeline_mode = #tpu.pipeline_mode<synchronous>, transform_indices = @transform_4, window_bounds = array<i64: 128, 384>}, {pipeline_mode = #tpu.pipeline_mode<synchronous>, transform_indices = @transform_5, window_bounds = array<i64: 128, 128>}, {pipeline_mode = #tpu.pipeline_mode<synchronous>, transform_indices = @transform_6, window_bounds = array<i64: 1, 128>}, {transform_indices = @transform_7, window_bounds = array<i64: 1, 16, 16, 128>}]} {
    %c0 = arith.constant 0 : index
    %c0_0 = arith.constant 0 : index
    %c0_1 = arith.constant 0 : index
    %c0_2 = arith.constant 0 : index
    %0 = vector.load %arg1[%c0, %c0_0, %c0_1, %c0_2] : memref<1x16x16x128xf32, #tpu.memory_space<vmem>>, vector<1x16x16x128xf32>
    %1 = vector.shape_cast %0 : vector<1x16x16x128xf32> to vector<16x16x128xf32>
    %2 = vector.shape_cast %1 : vector<16x16x128xf32> to vector<256x128xf32>
    %3 = arith.truncf %2 : vector<256x128xf32> to vector<256x128xbf16>
    %c0_3 = arith.constant 0 : index
    %c0_4 = arith.constant 0 : index
    %4 = vector.load %arg2[%c0_3, %c0_4] : memref<128x384xbf16, #tpu.memory_space<vmem>>, vector<128x384xbf16>
    %cst = arith.constant dense<0.000000e+00> : vector<256x384xf32>
    %5 = tpu.matmul %3, %4, %cst {dimension_numbers = #tpu.dot_dimension_numbers<[1], [0], [0], [1], [0, 0, 1, 1], [], []>} : vector<256x128xbf16>, vector<128x384xbf16>, vector<256x384xf32> -> vector<256x384xf32>
    %c0_5 = arith.constant 0 : index
    %c0_6 = arith.constant 0 : index
    %6 = vector.load %arg3[%c0_5, %c0_6] : memref<1x384xf32, #tpu.memory_space<vmem>>, vector<1x384xf32>
    %7 = vector.broadcast %6 : vector<1x384xf32> to vector<256x384xf32>
    %8 = arith.addf %5, %7 : vector<256x384xf32>
    %9 = vector.shape_cast %8 : vector<256x384xf32> to vector<16x16x384xf32>
    %10 = vector.extract_strided_slice %9 {offsets = [0, 0, 0], sizes = [16, 16, 128], strides = [1, 1, 1]} : vector<16x16x384xf32> to vector<16x16x128xf32>
    %11 = vector.extract_strided_slice %9 {offsets = [0, 0, 128], sizes = [16, 16, 128], strides = [1, 1, 1]} : vector<16x16x384xf32> to vector<16x16x128xf32>
    %12 = vector.extract_strided_slice %9 {offsets = [0, 0, 256], sizes = [16, 16, 128], strides = [1, 1, 1]} : vector<16x16x384xf32> to vector<16x16x128xf32>
    %13 = vector.shape_cast %12 : vector<16x16x128xf32> to vector<256x128xf32>
    %14 = tpu.iota {dimensions = array<i32: 2>} : vector<1x16x128xi32>
    %c32_i32 = arith.constant 32 : i32
    %15 = vector.broadcast %c32_i32 : i32 to vector<1x16x128xi32>
    %16 = arith.cmpi slt, %14, %15 : vector<1x16x128xi32>
    %c64_i32 = arith.constant 64 : i32
    %17 = vector.broadcast %c64_i32 : i32 to vector<1x16x128xi32>
    %18 = arith.cmpi slt, %14, %17 : vector<1x16x128xi32>
    %c96_i32 = arith.constant 96 : i32
    %19 = vector.broadcast %c96_i32 : i32 to vector<1x16x128xi32>
    %20 = arith.cmpi slt, %14, %19 : vector<1x16x128xi32>
    %21 = tpu.iota {dimensions = array<i32: 1>} : vector<1x16x128xi32>
    %c0_i32 = arith.constant 0 : i32
    %22 = vector.broadcast %c0_i32 : i32 to vector<1x16x128xi32>
    %23 = arith.cmpi eq, %21, %22 : vector<1x16x128xi32>
    %c15_i32 = arith.constant 15 : i32
    %24 = vector.broadcast %c15_i32 : i32 to vector<1x16x128xi32>
    %25 = arith.cmpi eq, %21, %24 : vector<1x16x128xi32>
    %26 = vector.extract_strided_slice %10 {offsets = [0, 0, 0], sizes = [1, 16, 128], strides = [1, 1, 1]} : vector<16x16x128xf32> to vector<1x16x128xf32>
    %27 = vector.extract_strided_slice %10 {offsets = [0, 0, 0], sizes = [15, 16, 128], strides = [1, 1, 1]} : vector<16x16x128xf32> to vector<15x16x128xf32>
    %28 = tpu.concatenate %26, %27 in 0 : vector<1x16x128xf32>, vector<15x16x128xf32> -> vector<16x16x128xf32>
    %29 = vector.extract_strided_slice %10 {offsets = [1, 0, 0], sizes = [15, 16, 128], strides = [1, 1, 1]} : vector<16x16x128xf32> to vector<15x16x128xf32>
    %30 = vector.extract_strided_slice %10 {offsets = [15, 0, 0], sizes = [1, 16, 128], strides = [1, 1, 1]} : vector<16x16x128xf32> to vector<1x16x128xf32>
    %31 = tpu.concatenate %29, %30 in 0 : vector<15x16x128xf32>, vector<1x16x128xf32> -> vector<16x16x128xf32>
    %c1_i32 = arith.constant 1 : i32
    %32 = tpu.dynamic_rotate %10 by %c1_i32 dim 1 : vector<16x16x128xf32>, i32 -> vector<16x16x128xf32>
    %33 = vector.shape_cast %23 : vector<1x16x128xi1> to vector<1x16x128xi1>
    %34 = vector.broadcast %33 : vector<1x16x128xi1> to vector<16x16x128xi1>
    %35 = arith.select %34, %10, %32 : vector<16x16x128xi1>, vector<16x16x128xf32>
    %c15_i32_7 = arith.constant 15 : i32
    %36 = tpu.dynamic_rotate %10 by %c15_i32_7 dim 1 : vector<16x16x128xf32>, i32 -> vector<16x16x128xf32>
    %37 = vector.shape_cast %25 : vector<1x16x128xi1> to vector<1x16x128xi1>
    %38 = vector.broadcast %37 : vector<1x16x128xi1> to vector<16x16x128xi1>
    %39 = arith.select %38, %10, %36 : vector<16x16x128xi1>, vector<16x16x128xf32>
    %40 = vector.shape_cast %20 : vector<1x16x128xi1> to vector<1x16x128xi1>
    %41 = vector.broadcast %40 : vector<1x16x128xi1> to vector<16x16x128xi1>
    %42 = arith.select %41, %35, %39 : vector<16x16x128xi1>, vector<16x16x128xf32>
    %43 = vector.shape_cast %18 : vector<1x16x128xi1> to vector<1x16x128xi1>
    %44 = vector.broadcast %43 : vector<1x16x128xi1> to vector<16x16x128xi1>
    %45 = arith.select %44, %31, %42 : vector<16x16x128xi1>, vector<16x16x128xf32>
    %46 = vector.shape_cast %16 : vector<1x16x128xi1> to vector<1x16x128xi1>
    %47 = vector.broadcast %46 : vector<1x16x128xi1> to vector<16x16x128xi1>
    %48 = arith.select %47, %28, %45 : vector<16x16x128xi1>, vector<16x16x128xf32>
    %49 = vector.shape_cast %48 : vector<16x16x128xf32> to vector<256x128xf32>
    %50 = vector.extract_strided_slice %11 {offsets = [0, 0, 0], sizes = [1, 16, 128], strides = [1, 1, 1]} : vector<16x16x128xf32> to vector<1x16x128xf32>
    %51 = vector.extract_strided_slice %11 {offsets = [0, 0, 0], sizes = [15, 16, 128], strides = [1, 1, 1]} : vector<16x16x128xf32> to vector<15x16x128xf32>
    %52 = tpu.concatenate %50, %51 in 0 : vector<1x16x128xf32>, vector<15x16x128xf32> -> vector<16x16x128xf32>
    %53 = vector.extract_strided_slice %11 {offsets = [1, 0, 0], sizes = [15, 16, 128], strides = [1, 1, 1]} : vector<16x16x128xf32> to vector<15x16x128xf32>
    %54 = vector.extract_strided_slice %11 {offsets = [15, 0, 0], sizes = [1, 16, 128], strides = [1, 1, 1]} : vector<16x16x128xf32> to vector<1x16x128xf32>
    %55 = tpu.concatenate %53, %54 in 0 : vector<15x16x128xf32>, vector<1x16x128xf32> -> vector<16x16x128xf32>
    %c1_i32_8 = arith.constant 1 : i32
    %56 = tpu.dynamic_rotate %11 by %c1_i32_8 dim 1 : vector<16x16x128xf32>, i32 -> vector<16x16x128xf32>
    %57 = vector.shape_cast %23 : vector<1x16x128xi1> to vector<1x16x128xi1>
    %58 = vector.broadcast %57 : vector<1x16x128xi1> to vector<16x16x128xi1>
    %59 = arith.select %58, %11, %56 : vector<16x16x128xi1>, vector<16x16x128xf32>
    %c15_i32_9 = arith.constant 15 : i32
    %60 = tpu.dynamic_rotate %11 by %c15_i32_9 dim 1 : vector<16x16x128xf32>, i32 -> vector<16x16x128xf32>
    %61 = vector.shape_cast %25 : vector<1x16x128xi1> to vector<1x16x128xi1>
    %62 = vector.broadcast %61 : vector<1x16x128xi1> to vector<16x16x128xi1>
    %63 = arith.select %62, %11, %60 : vector<16x16x128xi1>, vector<16x16x128xf32>
    %64 = vector.shape_cast %20 : vector<1x16x128xi1> to vector<1x16x128xi1>
    %65 = vector.broadcast %64 : vector<1x16x128xi1> to vector<16x16x128xi1>
    %66 = arith.select %65, %52, %55 : vector<16x16x128xi1>, vector<16x16x128xf32>
    %67 = vector.shape_cast %18 : vector<1x16x128xi1> to vector<1x16x128xi1>
    %68 = vector.broadcast %67 : vector<1x16x128xi1> to vector<16x16x128xi1>
    %69 = arith.select %68, %63, %66 : vector<16x16x128xi1>, vector<16x16x128xf32>
    %70 = vector.shape_cast %16 : vector<1x16x128xi1> to vector<1x16x128xi1>
    %71 = vector.broadcast %70 : vector<1x16x128xi1> to vector<16x16x128xi1>
    %72 = arith.select %71, %59, %69 : vector<16x16x128xi1>, vector<16x16x128xf32>
    %73 = vector.shape_cast %72 : vector<16x16x128xf32> to vector<256x128xf32>
    %74 = arith.addf %49, %73 : vector<256x128xf32>
    %75 = arith.addf %74, %13 : vector<256x128xf32>
    %cst_10 = arith.constant dense<0.000000e+00> : vector<128xf32>
    %76 = vector.multi_reduction <add>, %75, %cst_10 [0] : vector<256x128xf32> to vector<128xf32>
    %77 = vector.shape_cast %76 : vector<128xf32> to vector<1x128xf32>
    %c0_11 = arith.constant 0 : index
    %c0_12 = arith.constant 0 : index
    %78 = vector.load %arg4[%c0_11, %c0_12] : memref<128x128xf32, #tpu.memory_space<vmem>>, vector<128x128xf32>
    %cst_13 = arith.constant dense<0.000000e+00> : vector<1x128xf32>
    %79 = tpu.matmul %77, %78, %cst_13 {dimension_numbers = #tpu.dot_dimension_numbers<[1], [0], [0], [1], [0, 0, 1, 1], [], []>} : vector<1x128xf32>, vector<128x128xf32>, vector<1x128xf32> -> vector<1x128xf32>
    %cst_14 = arith.constant 5.000000e-01 : f32
    %80 = vector.broadcast %cst_14 : f32 to vector<1x128xf32>
    %81 = arith.mulf %80, %79 : vector<1x128xf32>
    %cst_15 = arith.constant 4.471500e-02 : f32
    %82 = vector.broadcast %cst_15 : f32 to vector<1x128xf32>
    %83 = arith.mulf %82, %79 : vector<1x128xf32>
    %84 = arith.mulf %83, %79 : vector<1x128xf32>
    %85 = arith.mulf %84, %79 : vector<1x128xf32>
    %86 = arith.addf %79, %85 : vector<1x128xf32>
    %cst_16 = arith.constant 0.797884583 : f32
    %87 = vector.broadcast %cst_16 : f32 to vector<1x128xf32>
    %88 = arith.mulf %87, %86 : vector<1x128xf32>
    %89 = math.tanh %88 : vector<1x128xf32>
    %cst_17 = arith.constant 1.000000e+00 : f32
    %90 = vector.broadcast %cst_17 : f32 to vector<1x128xf32>
    %91 = arith.addf %90, %89 : vector<1x128xf32>
    %92 = arith.mulf %81, %91 : vector<1x128xf32>
    %c0_18 = arith.constant 0 : index
    %c0_19 = arith.constant 0 : index
    %93 = vector.load %arg5[%c0_18, %c0_19] : memref<128x384xf32, #tpu.memory_space<vmem>>, vector<128x384xf32>
    %cst_20 = arith.constant dense<0.000000e+00> : vector<1x384xf32>
    %94 = tpu.matmul %92, %93, %cst_20 {dimension_numbers = #tpu.dot_dimension_numbers<[1], [0], [0], [1], [0, 0, 1, 1], [], []>} : vector<1x128xf32>, vector<128x384xf32>, vector<1x384xf32> -> vector<1x384xf32>
    %95 = vector.extract_strided_slice %94 {offsets = [0, 0], sizes = [1, 128], strides = [1, 1]} : vector<1x384xf32> to vector<1x128xf32>
    %96 = vector.extract_strided_slice %94 {offsets = [0, 128], sizes = [1, 128], strides = [1, 1]} : vector<1x384xf32> to vector<1x128xf32>
    %97 = vector.extract_strided_slice %94 {offsets = [0, 256], sizes = [1, 128], strides = [1, 1]} : vector<1x384xf32> to vector<1x128xf32>
    %98 = arith.maximumf %95, %96 : vector<1x128xf32>
    %99 = arith.maximumf %98, %97 : vector<1x128xf32>
    %100 = arith.subf %95, %99 : vector<1x128xf32>
    %101 = math.exp %100 : vector<1x128xf32>
    %102 = arith.subf %96, %99 : vector<1x128xf32>
    %103 = math.exp %102 : vector<1x128xf32>
    %104 = arith.subf %97, %99 : vector<1x128xf32>
    %105 = math.exp %104 : vector<1x128xf32>
    %106 = arith.addf %101, %103 : vector<1x128xf32>
    %107 = arith.addf %106, %105 : vector<1x128xf32>
    %108 = tpu.reciprocal %107 {approx = true} : vector<1x128xf32> -> vector<1x128xf32>
    %109 = arith.mulf %101, %108 : vector<1x128xf32>
    %110 = arith.mulf %103, %108 : vector<1x128xf32>
    %111 = arith.mulf %105, %108 : vector<1x128xf32>
    %112 = vector.broadcast %109 : vector<1x128xf32> to vector<256x128xf32>
    %113 = arith.mulf %112, %49 : vector<256x128xf32>
    %114 = vector.broadcast %110 : vector<1x128xf32> to vector<256x128xf32>
    %115 = arith.mulf %114, %73 : vector<256x128xf32>
    %116 = arith.addf %113, %115 : vector<256x128xf32>
    %117 = vector.broadcast %111 : vector<1x128xf32> to vector<256x128xf32>
    %118 = arith.mulf %117, %13 : vector<256x128xf32>
    %119 = arith.addf %116, %118 : vector<256x128xf32>
    %120 = arith.truncf %119 : vector<256x128xf32> to vector<256x128xbf16>
    %c0_21 = arith.constant 0 : index
    %c0_22 = arith.constant 0 : index
    %121 = vector.load %arg6[%c0_21, %c0_22] : memref<128x128xbf16, #tpu.memory_space<vmem>>, vector<128x128xbf16>
    %cst_23 = arith.constant dense<0.000000e+00> : vector<256x128xf32>
    %122 = tpu.matmul %120, %121, %cst_23 {dimension_numbers = #tpu.dot_dimension_numbers<[1], [0], [0], [1], [0, 0, 1, 1], [], []>} : vector<256x128xbf16>, vector<128x128xbf16>, vector<256x128xf32> -> vector<256x128xf32>
    %c0_24 = arith.constant 0 : index
    %c0_25 = arith.constant 0 : index
    %123 = vector.load %arg7[%c0_24, %c0_25] : memref<1x128xf32, #tpu.memory_space<vmem>>, vector<1x128xf32>
    %124 = vector.broadcast %123 : vector<1x128xf32> to vector<256x128xf32>
    %125 = arith.addf %122, %124 : vector<256x128xf32>
    %126 = vector.shape_cast %125 : vector<256x128xf32> to vector<16x16x128xf32>
    %c0_26 = arith.constant 0 : index
    %c0_27 = arith.constant 0 : index
    %c0_28 = arith.constant 0 : index
    %c0_29 = arith.constant 0 : index
    %127 = vector.load %arg8[%c0_26, %c0_27, %c0_28, %c0_29] : memref<1x16x16x128xf32, #tpu.memory_space<vmem>>, vector<1x16x16x128xf32>
    %128 = vector.shape_cast %127 : vector<1x16x16x128xf32> to vector<16x16x128xf32>
    %129 = vector.shape_cast %126 : vector<16x16x128xf32> to vector<1x16x16x128xf32>
    tpu.vector_store %arg8[%c0_26, %c0_27, %c0_28, %c0_29], %129 {strides = array<i32>} : memref<1x16x16x128xf32, #tpu.memory_space<vmem>>, vector<1x16x16x128xf32>,
    return
  }
  func.func @transform_0(%arg0: i32) -> (i32, i32, i32, i32) {
    %c0_i32 = arith.constant 0 : i32
    %c0_i32_0 = arith.constant 0 : i32
    %c0_i32_1 = arith.constant 0 : i32
    %c0_i32_2 = arith.constant 0 : i32
    return %arg0, %c0_i32, %c0_i32_0, %c0_i32_1 : i32, i32, i32, i32
  }
  func.func @transform_1(%arg0: i32) -> (i32, i32) {
    %c0_i32 = arith.constant 0 : i32
    %c0_i32_0 = arith.constant 0 : i32
    %c0_i32_1 = arith.constant 0 : i32
    return %c0_i32, %c0_i32_0 : i32, i32
  }
  func.func @transform_2(%arg0: i32) -> (i32, i32) {
    %c0_i32 = arith.constant 0 : i32
    %c0_i32_0 = arith.constant 0 : i32
    %c0_i32_1 = arith.constant 0 : i32
    return %c0_i32, %c0_i32_0 : i32, i32
  }
  func.func @transform_3(%arg0: i32) -> (i32, i32) {
    %c0_i32 = arith.constant 0 : i32
    %c0_i32_0 = arith.constant 0 : i32
    %c0_i32_1 = arith.constant 0 : i32
    return %c0_i32, %c0_i32_0 : i32, i32
  }
  func.func @transform_4(%arg0: i32) -> (i32, i32) {
    %c0_i32 = arith.constant 0 : i32
    %c0_i32_0 = arith.constant 0 : i32
    %c0_i32_1 = arith.constant 0 : i32
    return %c0_i32, %c0_i32_0 : i32, i32
  }
  func.func @transform_5(%arg0: i32) -> (i32, i32) {
    %c0_i32 = arith.constant 0 : i32
    %c0_i32_0 = arith.constant 0 : i32
    %c0_i32_1 = arith.constant 0 : i32
    return %c0_i32, %c0_i32_0 : i32, i32
  }
  func.func @transform_6(%arg0: i32) -> (i32, i32) {
    %c0_i32 = arith.constant 0 : i32
    %c0_i32_0 = arith.constant 0 : i32
    %c0_i32_1 = arith.constant 0 : i32
    return %c0_i32, %c0_i32_0 : i32, i32
  }
  func.func @transform_7(%arg0: i32) -> (i32, i32, i32, i32) {
    %c0_i32 = arith.constant 0 : i32
    %c0_i32_0 = arith.constant 0 : i32
    %c0_i32_1 = arith.constant 0 : i32
    %c0_i32_2 = arith.constant 0 : i32
    return %arg0, %c0_i32, %c0_i32_0, %c0_i32_1 : i32, i32, i32, i32
  }
}

</mosaic_0001>

<llo_original>
// kernel: s2_attention_nhwc.1
$region0: #{s2_attention_nhwc.1}
  #allocation0 [shape = 'u32[]', space=smem, size = 0x4, offset = 0x4, fixed_abs, tag = 'smem constant byte address 0x4 - core index']
  #allocation1 [shape = 'u32[72,128]{1,0:T(1,128)}', space=vmem, size = 0x9000, scoped, tag = 'internal scratch']
  %s0 = inlined_call_operand.vmem [shape: f32[2,16,16,128], index: 0, kind: input, shape index: {}]
  %s1 = inlined_call_operand.vmem [shape: bf16[128,384], index: 1, kind: input, shape index: {}]
  %s2 = inlined_call_operand.vmem [shape: f32[1,384], index: 2, kind: input, shape index: {}]
  %s3 = inlined_call_operand.vmem [shape: f32[128,128], index: 3, kind: input, shape index: {}]
  %s4 = inlined_call_operand.vmem [shape: f32[128,384], index: 4, kind: input, shape index: {}]
  %s5 = inlined_call_operand.vmem [shape: bf16[128,128], index: 5, kind: input, shape index: {}]
  %s6 = inlined_call_operand.vmem [shape: f32[1,128], index: 6, kind: input, shape index: {}]
  %s7 = inlined_call_operand.hbm [shape: f32[2,16,16,128], index: 7, kind: output, shape index: {}]
  %s8 = sld [smem:[#allocation0]]
  $region61: #{s2_attention_nhwc.1} parent=0
    _
  %s10 = ssub.s32 1, %s8
  %s11 = scalar_select 0, %s10, %s8
  $region1: #{s2_attention_nhwc.1} parent=0
    #allocation2 [shape = 'u8[262144]{0}', space=vmem, size = 0x40000, scoped, tag = 'output window, operand 0']
    #allocation3 [shape = 's32[2]{0}', space=sflag, size = 0x8, scoped, tag = 'scoped memory for s2_attention_nhwc.1']
    %12 = vsyncpa [#allocation3], 0
    %s13 = scalar_lea.sflag [#allocation3], 1
    %14 = vsyncpa %s13, 0
    loop: start=0, step=1, limit=4
    $region2: #{s2_attention_nhwc.1} parent=1 // loop_pre_header
      _
    $region3: #{s2_attention_nhwc.1} parent=1 // loop_header
      %s16 = sphi 0, %s20
      %p17 = scmp.ge.s32.totalorder %s16, 4
      %s26 = sphi 0, %s28
      %s29 = sphi 0, %s26
      %s30 = sphi 0, %s29
      %s46 = sphi 0, %s30
      %s50 = sphi 0, %s50
      %s52 = sphi 0, %s50
      %s53 = sphi 0, %s52
      %s67 = sphi 0, %s53
      %s71 = sphi 0, %s71
      %s73 = sphi 0, %s71
      %s74 = sphi 0, %s73
      %s88 = sphi 0, %s74
      %s92 = sphi 0, %s92
      %s94 = sphi 0, %s92
      %s95 = sphi 0, %s94
      %s109 = sphi 0, %s95
      %s113 = sphi 0, %s113
      %s115 = sphi 0, %s113
      %s116 = sphi 0, %s115
      %s130 = sphi 0, %s116
      %s134 = sphi 0, %s134
      %s136 = sphi 0, %s134
      %s137 = sphi 0, %s136
      %s151 = sphi 0, %s137
      %s155 = sphi 0, %s155
      %s157 = sphi 0, %s155
      %s158 = sphi 0, %s157
      %s172 = sphi 0, %s158
      %s178 = sphi 0, %s180
      %s181 = sphi 0, %s178
      %s182 = sphi 0, %s181
      %s198 = sphi 0, %s182
    $region4: #{s2_attention_nhwc.1} parent=1 // loop_header_branch
      %19 = sbr.rel (%p17) target = $region8
    $region5: #{s2_attention_nhwc.1} parent=1 // loop_body
      %s21 = ssub.s32 %s16, 1
      %s22 = ssub.s32 %s16, 2
      %s23 = sadd.s32 %s16, 1
      %s24 = ssub.s32 %s16, %s23
      %p25 = scmp.eq.s32.totalorder %s24, 0
      %s27 = sadd.s32 %s26, 1
      %s28 = scalar_select %p25, %s26, %s27
      %p31 = pneg %p25
      %p32 = scmp.eq.s32.totalorder %s16, 1
      %p33 = por %p31, %p32
      %p34 = scmp.ne.s32.totalorder %s26, %s29
      %p35 = scmp.eq.s32.totalorder %s16, 0
      %p36 = por %p34, %p35
      %p37 = scmp.ne.s32.totalorder %s26, %s29
      %p38 = scmp.eq.s32.totalorder %s21, 1
      %p39 = por %p37, %p38
      %p40 = scmp.ne.s32.totalorder %s29, %s30
      %p41 = scmp.eq.s32.totalorder %s21, 0
      %p42 = por %p40, %p41
      %p43 = scmp.ne.s32.totalorder %s29, %s30
      %p44 = scmp.eq.s32.totalorder %s22, 1
      %p45 = por %p43, %p44
      %p47 = scmp.ne.s32.totalorder %s30, %s46
      %p48 = scmp.eq.s32.totalorder %s22, 0
      %p49 = por %p47, %p48
      %s51 = sadd.s32 %s50, 1
      %p54 = scmp.eq.s32.totalorder %s16, 1
      %p55 = scmp.ne.s32.totalorder %s50, %s52
      %p56 = scmp.eq.s32.totalorder %s16, 0
      %p57 = por %p55, %p56
      %p58 = scmp.ne.s32.totalorder %s50, %s52
      %p59 = scmp.eq.s32.totalorder %s21, 1
      %p60 = por %p58, %p59
      %p61 = scmp.ne.s32.totalorder %s52, %s53
      %p62 = scmp.eq.s32.totalorder %s21, 0
      %p63 = por %p61, %p62
      %p64 = scmp.ne.s32.totalorder %s52, %s53
      %p65 = scmp.eq.s32.totalorder %s22, 1
      %p66 = por %p64, %p65
      %p68 = scmp.ne.s32.totalorder %s53, %s67
      %p69 = scmp.eq.s32.totalorder %s22, 0
      %p70 = por %p68, %p69
      %s72 = sadd.s32 %s71, 1
      %p75 = scmp.eq.s32.totalorder %s16, 1
      %p76 = scmp.ne.s32.totalorder %s71, %s73
      %p77 = scmp.eq.s32.totalorder %s16, 0
      %p78 = por %p76, %p77
      %p79 = scmp.ne.s32.totalorder %s71, %s73
      %p80 = scmp.eq.s32.totalorder %s21, 1
      %p81 = por %p79, %p80
      %p82 = scmp.ne.s32.totalorder %s73, %s74
      %p83 = scmp.eq.s32.totalorder %s21, 0
      %p84 = por %p82, %p83
      %p85 = scmp.ne.s32.totalorder %s73, %s74
      %p86 = scmp.eq.s32.totalorder %s22, 1
      %p87 = por %p85, %p86
      %p89 = scmp.ne.s32.totalorder %s74, %s88
      %p90 = scmp.eq.s32.totalorder %s22, 0
      %p91 = por %p89, %p90
      %s93 = sadd.s32 %s92, 1
      %p96 = scmp.eq.s32.totalorder %s16, 1
      %p97 = scmp.ne.s32.totalorder %s92, %s94
      %p98 = scmp.eq.s32.totalorder %s16, 0
      %p99 = por %p97, %p98
      %p100 = scmp.ne.s32.totalorder %s92, %s94
      %p101 = scmp.eq.s32.totalorder %s21, 1
      %p102 = por %p100, %p101
      %p103 = scmp.ne.s32.totalorder %s94, %s95
      %p104 = scmp.eq.s32.totalorder %s21, 0
      %p105 = por %p103, %p104
      %p106 = scmp.ne.s32.totalorder %s94, %s95
      %p107 = scmp.eq.s32.totalorder %s22, 1
      %p108 = por %p106, %p107
      %p110 = scmp.ne.s32.totalorder %s95, %s109
      %p111 = scmp.eq.s32.totalorder %s22, 0
      %p112 = por %p110, %p111
      %s114 = sadd.s32 %s113, 1
      %p117 = scmp.eq.s32.totalorder %s16, 1
      %p118 = scmp.ne.s32.totalorder %s113, %s115
      %p119 = scmp.eq.s32.totalorder %s16, 0
      %p120 = por %p118, %p119
      %p121 = scmp.ne.s32.totalorder %s113, %s115
      %p122 = scmp.eq.s32.totalorder %s21, 1
      %p123 = por %p121, %p122
      %p124 = scmp.ne.s32.totalorder %s115, %s116
      %p125 = scmp.eq.s32.totalorder %s21, 0
      %p126 = por %p124, %p125
      %p127 = scmp.ne.s32.totalorder %s115, %s116
      %p128 = scmp.eq.s32.totalorder %s22, 1
      %p129 = por %p127, %p128
      %p131 = scmp.ne.s32.totalorder %s116, %s130
      %p132 = scmp.eq.s32.totalorder %s22, 0
      %p133 = por %p131, %p132
      %s135 = sadd.s32 %s134, 1
      %p138 = scmp.eq.s32.totalorder %s16, 1
      %p139 = scmp.ne.s32.totalorder %s134, %s136
      %p140 = scmp.eq.s32.totalorder %s16, 0
      %p141 = por %p139, %p140
      %p142 = scmp.ne.s32.totalorder %s134, %s136
      %p143 = scmp.eq.s32.totalorder %s21, 1
      %p144 = por %p142, %p143
      %p145 = scmp.ne.s32.totalorder %s136, %s137
      %p146 = scmp.eq.s32.totalorder %s21, 0
      %p147 = por %p145, %p146
      %p148 = scmp.ne.s32.totalorder %s136, %s137
      %p149 = scmp.eq.s32.totalorder %s22, 1
      %p150 = por %p148, %p149
      %p152 = scmp.ne.s32.totalorder %s137, %s151
      %p153 = scmp.eq.s32.totalorder %s22, 0
      %p154 = por %p152, %p153
      %s156 = sadd.s32 %s155, 1
      %p159 = scmp.eq.s32.totalorder %s16, 1
      %p160 = scmp.ne.s32.totalorder %s155, %s157
      %p161 = scmp.eq.s32.totalorder %s16, 0
      %p162 = por %p160, %p161
      %p163 = scmp.ne.s32.totalorder %s155, %s157
      %p164 = scmp.eq.s32.totalorder %s21, 1
      %p165 = por %p163, %p164
      %p166 = scmp.ne.s32.totalorder %s157, %s158
      %p167 = scmp.eq.s32.totalorder %s21, 0
      %p168 = por %p166, %p167
      %p169 = scmp.ne.s32.totalorder %s157, %s158
      %p170 = scmp.eq.s32.totalorder %s22, 1
      %p171 = por %p169, %p170
      %p173 = scmp.ne.s32.totalorder %s158, %s172
      %p174 = scmp.eq.s32.totalorder %s22, 0
      %p175 = por %p173, %p174
      %s176 = ssub.s32 %s16, %s23
      %p177 = scmp.eq.s32.totalorder %s176, 0
      %s179 = sadd.s32 %s178, 1
      %s180 = scalar_select %p177, %s178, %s179
      %p183 = pneg %p177
      %p184 = scmp.eq.s32.totalorder %s16, 1
      %p185 = por %p183, %p184
      %p186 = scmp.ne.s32.totalorder %s178, %s181
      %p187 = scmp.eq.s32.totalorder %s16, 0
      %p188 = por %p186, %p187
      %p189 = scmp.ne.s32.totalorder %s178, %s181
      %p190 = scmp.eq.s32.totalorder %s21, 1
      %p191 = por %p189, %p190
      %p192 = scmp.ne.s32.totalorder %s181, %s182
      %p193 = scmp.eq.s32.totalorder %s21, 0
      %p194 = por %p192, %p193
      %p195 = scmp.ne.s32.totalorder %s181, %s182
      %p196 = scmp.eq.s32.totalorder %s22, 1
      %p197 = por %p195, %p196
      %p199 = scmp.ne.s32.totalorder %s182, %s198
      %p200 = scmp.eq.s32.totalorder %s22, 0
      %p201 = por %p199, %p200
      %p202 = scmp.le.s32.totalorder 1, %s16
      %p203 = scmp.lt.s32.totalorder %s16, 3
      %p204 = pnand %p202, %p203
      %p205 = pneg %p204
      // Predicated region
      $region9: #{s2_attention_nhwc.1} parent=5 // pred_check
        _
      $region10: #{s2_attention_nhwc.1} parent=5 // pred_check_branch
        %207 = sbr.rel (%p204) target = $region12
      $region11: #{s2_attention_nhwc.1} parent=5 // pred_region
        %s208 = ssub.s32 %s16, 1
        // Predicated region
        $region13: #{s2_attention_nhwc.1} parent=11 // pred_check
          %p209 = pneg %p63
        $region14: #{s2_attention_nhwc.1} parent=11 // pred_check_branch
          %211 = sbr.rel (%p209) target = $region16
        $region15: #{s2_attention_nhwc.1} parent=11 // pred_region
          _
        $region16: #{s2_attention_nhwc.1} parent=11 // pred_fallthru
          _
        // Predicated region
        $region17: #{s2_attention_nhwc.1} parent=11 // pred_check
          %p212 = pneg %p84
        $region18: #{s2_attention_nhwc.1} parent=11 // pred_check_branch
          %214 = sbr.rel (%p212) target = $region20
        $region19: #{s2_attention_nhwc.1} parent=11 // pred_region
          _
        $region20: #{s2_attention_nhwc.1} parent=11 // pred_fallthru
          _
        // Predicated region
        $region21: #{s2_attention_nhwc.1} parent=11 // pred_check
          %p215 = pneg %p105
        $region22: #{s2_attention_nhwc.1} parent=11 // pred_check_branch
          %217 = sbr.rel (%p215) target = $region24
        $region23: #{s2_attention_nhwc.1} parent=11 // pred_region
          _
        $region24: #{s2_attention_nhwc.1} parent=11 // pred_fallthru
          _
        // Predicated region
        $region25: #{s2_attention_nhwc.1} parent=11 // pred_check
          %p218 = pneg %p126
        $region26: #{s2_attention_nhwc.1} parent=11 // pred_check_branch
          %220 = sbr.rel (%p218) target = $region28
        $region27: #{s2_attention_nhwc.1} parent=11 // pred_region
          _
        $region28: #{s2_attention_nhwc.1} parent=11 // pred_fallthru
          _
        // Predicated region
        $region29: #{s2_attention_nhwc.1} parent=11 // pred_check
          %p221 = pneg %p147
        $region30: #{s2_attention_nhwc.1} parent=11 // pred_check_branch
          %223 = sbr.rel (%p221) target = $region32
        $region31: #{s2_attention_nhwc.1} parent=11 // pred_region
          _
        $region32: #{s2_attention_nhwc.1} parent=11 // pred_fallthru
          _
        // Predicated region
        $region33: #{s2_attention_nhwc.1} parent=11 // pred_check
          %p224 = pneg %p168
        $region34: #{s2_attention_nhwc.1} parent=11 // pred_check_branch
          %226 = sbr.rel (%p224) target = $region36
        $region35: #{s2_attention_nhwc.1} parent=11 // pred_region
          _
        $region36: #{s2_attention_nhwc.1} parent=11 // pred_fallthru
          _
      $region12: #{s2_attention_nhwc.1} parent=5 // pred_fallthru
        _
      %p227 = scmp.lt.s32.totalorder %s16, 2
      // Predicated region
      $region37: #{s2_attention_nhwc.1} parent=5 // pred_check
        %p228 = pneg %p227
      $region38: #{s2_attention_nhwc.1} parent=5 // pred_check_branch
        %230 = sbr.rel (%p228) target = $region40
      $region39: #{s2_attention_nhwc.1} parent=5 // pred_region
        // Predicated region
        $region41: #{s2_attention_nhwc.1} parent=39 // pred_check
          %p231 = pneg %p36
        $region42: #{s2_attention_nhwc.1} parent=39 // pred_check_branch
          %233 = sbr.rel (%p231) target = $region44
        $region43: #{s2_attention_nhwc.1} parent=39 // pred_region
          %p234 = scmp.lt.s32.totalorder %s16, 1
          %s235 = scalar_select %p234, %s16, 1
          %s236 = smul.addr %s235, 32
          %s237 = smul.addr %s236, 8
          %s238 = scalar_lea.vmem %s0, %s237
        $region44: #{s2_attention_nhwc.1} parent=39 // pred_fallthru
          _
      $region40: #{s2_attention_nhwc.1} parent=5 // pred_fallthru
        _
      %p239 = scmp.le.s32.totalorder 1, %s16
      %p240 = scmp.lt.s32.totalorder %s16, 3
      %p241 = pnand %p239, %p240
      %p242 = pneg %p241
      // Predicated region
      $region45: #{s2_attention_nhwc.1} parent=5 // pred_check
        _
      $region46: #{s2_attention_nhwc.1} parent=5 // pred_check_branch
        %244 = sbr.rel (%p241) target = $region48
      $region47: #{s2_attention_nhwc.1} parent=5 // pred_region
        %s245 = ssub.s32 %s16, 1
        %p246 = scmp.lt.s32.totalorder %s21, 1
        %s247 = scalar_select %p246, %s21, 1
        %s248 = smul.addr %s247, 32
        %s249 = smul.addr %s248, 8
        %s250 = scalar_lea.vmem %s0, %s249
        %p251 = pneg %p42
        %p252 = pneg %p39
        %p253 = pneg %p63
        %p254 = pneg %p60
        %p255 = pneg %p84
        %p256 = pneg %p81
        %p257 = pneg %p105
        %p258 = pneg %p102
        %p259 = pneg %p126
        %p260 = pneg %p123
        %p261 = pneg %p147
        %p262 = pneg %p144
        %p263 = pneg %p168
        %p264 = pneg %p165
        %p265 = pneg %p194
        %p266 = pneg %p191
        %s267 = sand.u32 %s181, 1
        %s268 = scalar_lea.sflag [#allocation3], %s267
        %s269 = sand.u32 %s181, 1
        %s270 = smul.addr %s269, 256
        %s271 = scalar_lea.vmem [#allocation2], %s270
        %p272 = scmp.lt.s32.totalorder %s21, 1
        %s273 = scalar_select %p272, %s21, 1
        %s274 = smul.addr %s273, 32
        %s275 = smul.addr %s274, 8
        %s276 = scalar_lea.vmem %s0, %s275
        %v277 = vld [vmem:[%s276] sm:$0xff]
        %v278 = vld [vmem:[%s276 + $0x8] sm:$0xff]
        %v279 = vld [vmem:[%s276 + $0x10] sm:$0xff]
        %v280 = vld [vmem:[%s276 + $0x18] sm:$0xff]
        %v281 = vld [vmem:[%s276 + $0x20] sm:$0xff]
        %v282 = vld [vmem:[%s276 + $0x28] sm:$0xff]
        %v283 = vld [vmem:[%s276 + $0x30] sm:$0xff]
        %v284 = vld [vmem:[%s276 + $0x38] sm:$0xff]
        %v285 = vld [vmem:[%s276 + $0x40] sm:$0xff]
        %v286 = vld [vmem:[%s276 + $0x48] sm:$0xff]
        %v287 = vld [vmem:[%s276 + $0x50] sm:$0xff]
        %v288 = vld [vmem:[%s276 + $0x58] sm:$0xff]
        %v289 = vld [vmem:[%s276 + $0x60] sm:$0xff]
        %v290 = vld [vmem:[%s276 + $0x68] sm:$0xff]
        %v291 = vld [vmem:[%s276 + $0x70] sm:$0xff]
        %v292 = vld [vmem:[%s276 + $0x78] sm:$0xff]
        %v293 = vld [vmem:[%s276 + $0x80] sm:$0xff]
        %v294 = vld [vmem:[%s276 + $0x88] sm:$0xff]
        %v295 = vld [vmem:[%s276 + $0x90] sm:$0xff]
        %v296 = vld [vmem:[%s276 + $0x98] sm:$0xff]
        %v297 = vld [vmem:[%s276 + $0xa0] sm:$0xff]
        %v298 = vld [vmem:[%s276 + $0xa8] sm:$0xff]
        %v299 = vld [vmem:[%s276 + $0xb0] sm:$0xff]
        %v300 = vld [vmem:[%s276 + $0xb8] sm:$0xff]
        %v301 = vld [vmem:[%s276 + $0xc0] sm:$0xff]
        %v302 = vld [vmem:[%s276 + $0xc8] sm:$0xff]
        %v303 = vld [vmem:[%s276 + $0xd0] sm:$0xff]
        %v304 = vld [vmem:[%s276 + $0xd8] sm:$0xff]
        %v305 = vld [vmem:[%s276 + $0xe0] sm:$0xff]
        %v306 = vld [vmem:[%s276 + $0xe8] sm:$0xff]
        %v307 = vld [vmem:[%s276 + $0xf0] sm:$0xff]
        %v308 = vld [vmem:[%s276 + $0xf8] sm:$0xff]
        %v309 = vpack.c.bf16 %v278, %v277
        %v310 = vpack.c.bf16 %v280, %v279
        %v311 = vpack.c.bf16 %v282, %v281
        %v312 = vpack.c.bf16 %v284, %v283
        %v313 = vpack.c.bf16 %v286, %v285
        %v314 = vpack.c.bf16 %v288, %v287
        %v315 = vpack.c.bf16 %v290, %v289
        %v316 = vpack.c.bf16 %v292, %v291
        %v317 = vpack.c.bf16 %v294, %v293
        %v318 = vpack.c.bf16 %v296, %v295
        %v319 = vpack.c.bf16 %v298, %v297
        %v320 = vpack.c.bf16 %v300, %v299
        %v321 = vpack.c.bf16 %v302, %v301
        %v322 = vpack.c.bf16 %v304, %v303
        %v323 = vpack.c.bf16 %v306, %v305
        %v324 = vpack.c.bf16 %v308, %v307
        %v325 = vld [vmem:[%s1] sm:$0xff]
        %v326 = vld [vmem:[%s1 + $0x8] sm:$0xf]
        %v327 = vld [vmem:[%s1 + $0xc] sm:$0xff]
        %v328 = vld [vmem:[%s1 + $0x14] sm:$0xf]
        %v329 = vld [vmem:[%s1 + $0x18] sm:$0xff]
        %v330 = vld [vmem:[%s1 + $0x20] sm:$0xf]
        %v331 = vld [vmem:[%s1 + $0x24] sm:$0xff]
        %v332 = vld [vmem:[%s1 + $0x2c] sm:$0xf]
        %v333 = vld [vmem:[%s1 + $0x30] sm:$0xff]
        %v334 = vld [vmem:[%s1 + $0x38] sm:$0xf]
        %v335 = vld [vmem:[%s1 + $0x3c] sm:$0xff]
        %v336 = vld [vmem:[%s1 + $0x44] sm:$0xf]
        %v337 = vld [vmem:[%s1 + $0x48] sm:$0xff]
        %v338 = vld [vmem:[%s1 + $0x50] sm:$0xf]
        %v339 = vld [vmem:[%s1 + $0x54] sm:$0xff]
        %v340 = vld [vmem:[%s1 + $0x5c] sm:$0xf]
        %v341 = vld [vmem:[%s1 + $0x60] sm:$0xff]
        %v342 = vld [vmem:[%s1 + $0x68] sm:$0xf]
        %v343 = vld [vmem:[%s1 + $0x6c] sm:$0xff]
        %v344 = vld [vmem:[%s1 + $0x74] sm:$0xf]
        %v345 = vld [vmem:[%s1 + $0x78] sm:$0xff]
        %v346 = vld [vmem:[%s1 + $0x80] sm:$0xf]
        %v347 = vld [vmem:[%s1 + $0x84] sm:$0xff]
        %v348 = vld [vmem:[%s1 + $0x8c] sm:$0xf]
        %v349 = vld [vmem:[%s1 + $0x90] sm:$0xff]
        %v350 = vld [vmem:[%s1 + $0x98] sm:$0xf]
        %v351 = vld [vmem:[%s1 + $0x9c] sm:$0xff]
        %v352 = vld [vmem:[%s1 + $0xa4] sm:$0xf]
        %v353 = vld [vmem:[%s1 + $0xa8] sm:$0xff]
        %v354 = vld [vmem:[%s1 + $0xb0] sm:$0xf]
        %v355 = vld [vmem:[%s1 + $0xb4] sm:$0xff]
        %v356 = vld [vmem:[%s1 + $0xbc] sm:$0xf]
        %v357 = vld [vmem:[%s2] sm:$0x7]
        %v359 = vperm.slane %v357, 0
        %v360 = vperm.slane %v357, 1
        %v361 = vperm.slane %v357, 2
        %v397 = vunpack.c.l.b16 %v325
        %v398 = vunpack.c.h.b16 %v325
        %v399 = vunpack.c.l.b16 %v326
        %v400 = vunpack.c.l.b16 %v327
        %v401 = vunpack.c.h.b16 %v327
        %v402 = vunpack.c.l.b16 %v328
        %v403 = vunpack.c.l.b16 %v329
        %v404 = vunpack.c.h.b16 %v329
        %v405 = vunpack.c.l.b16 %v330
        %v406 = vunpack.c.l.b16 %v331
        %v407 = vunpack.c.h.b16 %v331
        %v408 = vunpack.c.l.b16 %v332
        %v409 = vunpack.c.l.b16 %v333
        %v410 = vunpack.c.h.b16 %v333
        %v411 = vunpack.c.l.b16 %v334
        %v412 = vunpack.c.l.b16 %v335
        %v413 = vunpack.c.h.b16 %v335
        %v414 = vunpack.c.l.b16 %v336
        %v415 = vunpack.c.l.b16 %v337
        %v416 = vunpack.c.h.b16 %v337
        %v417 = vunpack.c.l.b16 %v338
        %v418 = vunpack.c.l.b16 %v339
        %v419 = vunpack.c.h.b16 %v339
        %v420 = vunpack.c.l.b16 %v340
        %v421 = vunpack.c.l.b16 %v341
        %v422 = vunpack.c.h.b16 %v341
        %v423 = vunpack.c.l.b16 %v342
        %v424 = vunpack.c.l.b16 %v343
        %v425 = vunpack.c.h.b16 %v343
        %v426 = vunpack.c.l.b16 %v344
        %v427 = vunpack.c.l.b16 %v345
        %v428 = vunpack.c.h.b16 %v345
        %v429 = vunpack.c.l.b16 %v346
        %v430 = vunpack.c.l.b16 %v347
        %v431 = vunpack.c.h.b16 %v347
        %v432 = vunpack.c.l.b16 %v348
        %v433 = vunpack.c.l.b16 %v349
        %v434 = vunpack.c.h.b16 %v349
        %v435 = vunpack.c.l.b16 %v350
        %v436 = vunpack.c.l.b16 %v351
        %v437 = vunpack.c.h.b16 %v351
        %v438 = vunpack.c.l.b16 %v352
        %v439 = vunpack.c.l.b16 %v353
        %v440 = vunpack.c.h.b16 %v353
        %v441 = vunpack.c.l.b16 %v354
        %v442 = vunpack.c.l.b16 %v355
        %v443 = vunpack.c.h.b16 %v355
        %v444 = vunpack.c.l.b16 %v356
        %v445 = vpack.c.b16 %v400, %v397
        %v446 = vpack.c.b16 %v401, %v398
        %v447 = vpack.c.b16 %v402, %v399
        %v448 = vpack.c.b16 %v406, %v403
        %v449 = vpack.c.b16 %v407, %v404
        %v450 = vpack.c.b16 %v408, %v405
        %v451 = vpack.c.b16 %v412, %v409
        %v452 = vpack.c.b16 %v413, %v410
        %v453 = vpack.c.b16 %v414, %v411
        %v454 = vpack.c.b16 %v418, %v415
        %v455 = vpack.c.b16 %v419, %v416
        %v456 = vpack.c.b16 %v420, %v417
        %v457 = vpack.c.b16 %v424, %v421
        %v458 = vpack.c.b16 %v425, %v422
        %v459 = vpack.c.b16 %v426, %v423
        %v460 = vpack.c.b16 %v430, %v427
        %v461 = vpack.c.b16 %v431, %v428
        %v462 = vpack.c.b16 %v432, %v429
        %v463 = vpack.c.b16 %v436, %v433
        %v464 = vpack.c.b16 %v437, %v434
        %v465 = vpack.c.b16 %v438, %v435
        %v466 = vpack.c.b16 %v442, %v439
        %v467 = vpack.c.b16 %v443, %v440
        %v468 = vpack.c.b16 %v444, %v441
        %493 = vmatpush.bf16.msra.mxu0 %v466
        %494 = vmatpush.bf16.msra.mxu0 %v463
        %495 = vmatpush.bf16.msra.mxu0 %v460
        %496 = vmatpush.bf16.msra.mxu0 %v457
        %497 = vmatpush.bf16.msra.mxu0 %v454
        %498 = vmatpush.bf16.msra.mxu0 %v451
        %499 = vmatpush.bf16.msra.mxu0 %v448
        %500 = vmatpush.bf16.msra.mxu0 %v445
        %501 = vmatmul.bf16.gmra.mxu0 %v309
        %v502 = vpop.f32.mrf.mxu0
        %v503 = vadd.f32 %v359, %v502
        %v504 = vpop.f32.mrf.mxu0
        %v505 = vadd.f32 %v359, %v504
        %506 = vmatmul.bf16.gmra.mxu0 %v310
        %v507 = vpop.f32.mrf.mxu0
        %v508 = vadd.f32 %v359, %v507
        %v509 = vpop.f32.mrf.mxu0
        %v510 = vadd.f32 %v359, %v509
        %511 = vmatmul.bf16.gmra.mxu0 %v311
        %v512 = vpop.f32.mrf.mxu0
        %v513 = vadd.f32 %v359, %v512
        %v514 = vpop.f32.mrf.mxu0
        %v515 = vadd.f32 %v359, %v514
        %516 = vmatmul.bf16.gmra.mxu0 %v312
        %v517 = vpop.f32.mrf.mxu0
        %v518 = vadd.f32 %v359, %v517
        %v519 = vpop.f32.mrf.mxu0
        %v520 = vadd.f32 %v359, %v519
        %521 = vmatmul.bf16.gmra.mxu0 %v313
        %v522 = vpop.f32.mrf.mxu0
        %v523 = vadd.f32 %v359, %v522
        %v524 = vpop.f32.mrf.mxu0
        %v525 = vadd.f32 %v359, %v524
        %526 = vmatmul.bf16.gmra.mxu0 %v314
        %v527 = vpop.f32.mrf.mxu0
        %v528 = vadd.f32 %v359, %v527
        %v529 = vpop.f32.mrf.mxu0
        %v530 = vadd.f32 %v359, %v529
        %531 = vmatmul.bf16.gmra.mxu0 %v315
        %v532 = vpop.f32.mrf.mxu0
        %v533 = vadd.f32 %v359, %v532
        %v534 = vpop.f32.mrf.mxu0
        %v535 = vadd.f32 %v359, %v534
        %536 = vmatmul.bf16.gmra.mxu0 %v316
        %v537 = vpop.f32.mrf.mxu0
        %v538 = vadd.f32 %v359, %v537
        %v539 = vpop.f32.mrf.mxu0
        %v540 = vadd.f32 %v359, %v539
        %541 = vmatmul.bf16.gmra.mxu0 %v317
        %v542 = vpop.f32.mrf.mxu0
        %v543 = vadd.f32 %v359, %v542
        %v544 = vpop.f32.mrf.mxu0
        %v545 = vadd.f32 %v359, %v544
        %546 = vmatmul.bf16.gmra.mxu0 %v318
        %v547 = vpop.f32.mrf.mxu0
        %v548 = vadd.f32 %v359, %v547
        %v549 = vpop.f32.mrf.mxu0
        %v550 = vadd.f32 %v359, %v549
        %551 = vmatmul.bf16.gmra.mxu0 %v319
        %v552 = vpop.f32.mrf.mxu0
        %v553 = vadd.f32 %v359, %v552
        %v554 = vpop.f32.mrf.mxu0
        %v555 = vadd.f32 %v359, %v554
        %556 = vmatmul.bf16.gmra.mxu0 %v320
        %v557 = vpop.f32.mrf.mxu0
        %v558 = vadd.f32 %v359, %v557
        %v559 = vpop.f32.mrf.mxu0
        %v560 = vadd.f32 %v359, %v559
        %561 = vmatmul.bf16.gmra.mxu0 %v321
        %v562 = vpop.f32.mrf.mxu0
        %v563 = vadd.f32 %v359, %v562
        %v564 = vpop.f32.mrf.mxu0
        %v565 = vadd.f32 %v359, %v564
        %566 = vmatmul.bf16.gmra.mxu0 %v322
        %v567 = vpop.f32.mrf.mxu0
        %v568 = vadd.f32 %v359, %v567
        %v569 = vpop.f32.mrf.mxu0
        %v570 = vadd.f32 %v359, %v569
        %571 = vmatmul.bf16.gmra.mxu0 %v323
        %v572 = vpop.f32.mrf.mxu0
        %v573 = vadd.f32 %v359, %v572
        %v574 = vpop.f32.mrf.mxu0
        %v575 = vadd.f32 %v359, %v574
        %576 = vmatmul.bf16.gmra.mxu0 %v324
        %v577 = vpop.f32.mrf.mxu0
        %v578 = vadd.f32 %v359, %v577
        %v579 = vpop.f32.mrf.mxu0
        %v580 = vadd.f32 %v359, %v579
        %581 = vdwg.mxu0
        %582 = vmatpush.bf16.msra.mxu0 %v467
        %583 = vmatpush.bf16.msra.mxu0 %v464
        %584 = vmatpush.bf16.msra.mxu0 %v461
        %585 = vmatpush.bf16.msra.mxu0 %v458
        %586 = vmatpush.bf16.msra.mxu0 %v455
        %587 = vmatpush.bf16.msra.mxu0 %v452
        %588 = vmatpush.bf16.msra.mxu0 %v449
        %589 = vmatpush.bf16.msra.mxu0 %v446
        %590 = vmatmul.bf16.gmra.mxu0 %v309
        %v591 = vpop.f32.mrf.mxu0
        %v592 = vadd.f32 %v360, %v591
        %v593 = vpop.f32.mrf.mxu0
        %v594 = vadd.f32 %v360, %v593
        %595 = vmatmul.bf16.gmra.mxu0 %v310
        %v596 = vpop.f32.mrf.mxu0
        %v597 = vadd.f32 %v360, %v596
        %v598 = vpop.f32.mrf.mxu0
        %v599 = vadd.f32 %v360, %v598
        %600 = vmatmul.bf16.gmra.mxu0 %v311
        %v601 = vpop.f32.mrf.mxu0
        %v602 = vadd.f32 %v360, %v601
        %v603 = vpop.f32.mrf.mxu0
        %v604 = vadd.f32 %v360, %v603
        %605 = vmatmul.bf16.gmra.mxu0 %v312
        %v606 = vpop.f32.mrf.mxu0
        %v607 = vadd.f32 %v360, %v606
        %v608 = vpop.f32.mrf.mxu0
        %v609 = vadd.f32 %v360, %v608
        %610 = vmatmul.bf16.gmra.mxu0 %v313
        %v611 = vpop.f32.mrf.mxu0
        %v612 = vadd.f32 %v360, %v611
        %v613 = vpop.f32.mrf.mxu0
        %v614 = vadd.f32 %v360, %v613
        %615 = vmatmul.bf16.gmra.mxu0 %v314
        %v616 = vpop.f32.mrf.mxu0
        %v617 = vadd.f32 %v360, %v616
        %v618 = vpop.f32.mrf.mxu0
        %v619 = vadd.f32 %v360, %v618
        %620 = vmatmul.bf16.gmra.mxu0 %v315
        %v621 = vpop.f32.mrf.mxu0
        %v622 = vadd.f32 %v360, %v621
        %v623 = vpop.f32.mrf.mxu0
        %v624 = vadd.f32 %v360, %v623
        %625 = vmatmul.bf16.gmra.mxu0 %v316
        %v626 = vpop.f32.mrf.mxu0
        %v627 = vadd.f32 %v360, %v626
        %v628 = vpop.f32.mrf.mxu0
        %v629 = vadd.f32 %v360, %v628
        %630 = vmatmul.bf16.gmra.mxu0 %v317
        %v631 = vpop.f32.mrf.mxu0
        %v632 = vadd.f32 %v360, %v631
        %v633 = vpop.f32.mrf.mxu0
        %v634 = vadd.f32 %v360, %v633
        %635 = vmatmul.bf16.gmra.mxu0 %v318
        %v636 = vpop.f32.mrf.mxu0
        %v637 = vadd.f32 %v360, %v636
        %v638 = vpop.f32.mrf.mxu0
        %v639 = vadd.f32 %v360, %v638
        %640 = vmatmul.bf16.gmra.mxu0 %v319
        %v641 = vpop.f32.mrf.mxu0
        %v642 = vadd.f32 %v360, %v641
        %v643 = vpop.f32.mrf.mxu0
        %v644 = vadd.f32 %v360, %v643
        %645 = vmatmul.bf16.gmra.mxu0 %v320
        %v646 = vpop.f32.mrf.mxu0
        %v647 = vadd.f32 %v360, %v646
        %v648 = vpop.f32.mrf.mxu0
        %v649 = vadd.f32 %v360, %v648
        %650 = vmatmul.bf16.gmra.mxu0 %v321
        %v651 = vpop.f32.mrf.mxu0
        %v652 = vadd.f32 %v360, %v651
        %v653 = vpop.f32.mrf.mxu0
        %v654 = vadd.f32 %v360, %v653
        %655 = vmatmul.bf16.gmra.mxu0 %v322
        %v656 = vpop.f32.mrf.mxu0
        %v657 = vadd.f32 %v360, %v656
        %v658 = vpop.f32.mrf.mxu0
        %v659 = vadd.f32 %v360, %v658
        %660 = vmatmul.bf16.gmra.mxu0 %v323
        %v661 = vpop.f32.mrf.mxu0
        %v662 = vadd.f32 %v360, %v661
        %v663 = vpop.f32.mrf.mxu0
        %v664 = vadd.f32 %v360, %v663
        %665 = vmatmul.bf16.gmra.mxu0 %v324
        %v666 = vpop.f32.mrf.mxu0
        %v667 = vadd.f32 %v360, %v666
        %v668 = vpop.f32.mrf.mxu0
        %v669 = vadd.f32 %v360, %v668
        %670 = vdwg.mxu0
        %671 = vmatpush.bf16.msra.mxu0 %v468
        %672 = vmatpush.bf16.msra.mxu0 %v465
        %673 = vmatpush.bf16.msra.mxu0 %v462
        %674 = vmatpush.bf16.msra.mxu0 %v459
        %675 = vmatpush.bf16.msra.mxu0 %v456
        %676 = vmatpush.bf16.msra.mxu0 %v453
        %677 = vmatpush.bf16.msra.mxu0 %v450
        %678 = vmatpush.bf16.msra.mxu0 %v447
        %679 = vmatmul.bf16.gmra.mxu0 %v309
        %v680 = vpop.f32.mrf.mxu0
        %v681 = vadd.f32 %v361, %v680
        %v682 = vpop.f32.mrf.mxu0
        %v683 = vadd.f32 %v361, %v682
        %684 = vmatmul.bf16.gmra.mxu0 %v310
        %v685 = vpop.f32.mrf.mxu0
        %v686 = vadd.f32 %v361, %v685
        %v687 = vpop.f32.mrf.mxu0
        %v688 = vadd.f32 %v361, %v687
        %689 = vmatmul.bf16.gmra.mxu0 %v311
        %v690 = vpop.f32.mrf.mxu0
        %v691 = vadd.f32 %v361, %v690
        %v692 = vpop.f32.mrf.mxu0
        %v693 = vadd.f32 %v361, %v692
        %694 = vmatmul.bf16.gmra.mxu0 %v312
        %v695 = vpop.f32.mrf.mxu0
        %v696 = vadd.f32 %v361, %v695
        %v697 = vpop.f32.mrf.mxu0
        %v698 = vadd.f32 %v361, %v697
        %699 = vmatmul.bf16.gmra.mxu0 %v313
        %v700 = vpop.f32.mrf.mxu0
        %v701 = vadd.f32 %v361, %v700
        %v702 = vpop.f32.mrf.mxu0
        %v703 = vadd.f32 %v361, %v702
        %704 = vmatmul.bf16.gmra.mxu0 %v314
        %v705 = vpop.f32.mrf.mxu0
        %v706 = vadd.f32 %v361, %v705
        %v707 = vpop.f32.mrf.mxu0
        %v708 = vadd.f32 %v361, %v707
        %709 = vmatmul.bf16.gmra.mxu0 %v315
        %v710 = vpop.f32.mrf.mxu0
        %v711 = vadd.f32 %v361, %v710
        %v712 = vpop.f32.mrf.mxu0
        %v713 = vadd.f32 %v361, %v712
        %714 = vmatmul.bf16.gmra.mxu0 %v316
        %v715 = vpop.f32.mrf.mxu0
        %v716 = vadd.f32 %v361, %v715
        %v717 = vpop.f32.mrf.mxu0
        %v718 = vadd.f32 %v361, %v717
        %719 = vmatmul.bf16.gmra.mxu0 %v317
        %v720 = vpop.f32.mrf.mxu0
        %v721 = vadd.f32 %v361, %v720
        %v722 = vpop.f32.mrf.mxu0
        %v723 = vadd.f32 %v361, %v722
        %724 = vmatmul.bf16.gmra.mxu0 %v318
        %v725 = vpop.f32.mrf.mxu0
        %v726 = vadd.f32 %v361, %v725
        %v727 = vpop.f32.mrf.mxu0
        %v728 = vadd.f32 %v361, %v727
        %729 = vmatmul.bf16.gmra.mxu0 %v319
        %v730 = vpop.f32.mrf.mxu0
        %v731 = vadd.f32 %v361, %v730
        %v732 = vpop.f32.mrf.mxu0
        %v733 = vadd.f32 %v361, %v732
        %734 = vmatmul.bf16.gmra.mxu0 %v320
        %v735 = vpop.f32.mrf.mxu0
        %v736 = vadd.f32 %v361, %v735
        %v737 = vpop.f32.mrf.mxu0
        %v738 = vadd.f32 %v361, %v737
        %739 = vmatmul.bf16.gmra.mxu0 %v321
        %v740 = vpop.f32.mrf.mxu0
        %v741 = vadd.f32 %v361, %v740
        %v742 = vpop.f32.mrf.mxu0
        %v743 = vadd.f32 %v361, %v742
        %744 = vmatmul.bf16.gmra.mxu0 %v322
        %v745 = vpop.f32.mrf.mxu0
        %v746 = vadd.f32 %v361, %v745
        %v747 = vpop.f32.mrf.mxu0
        %v748 = vadd.f32 %v361, %v747
        %749 = vmatmul.bf16.gmra.mxu0 %v323
        %v750 = vpop.f32.mrf.mxu0
        %v751 = vadd.f32 %v361, %v750
        %v752 = vpop.f32.mrf.mxu0
        %v753 = vadd.f32 %v361, %v752
        %754 = vmatmul.bf16.gmra.mxu0 %v324
        %v755 = vpop.f32.mrf.mxu0
        %v756 = vadd.f32 %v361, %v755
        %v757 = vpop.f32.mrf.mxu0
        %v758 = vadd.f32 %v361, %v757
        %759 = vdwg.mxu0
        %v760 = vlaneseq
        %v761 = vand.u32 %v760, 127
        %vm762 = vcmp.lt.s32.totalorder %v761, 32
        %vm763 = vcmp.lt.s32.totalorder %v761, 64
        %vm764 = vcmp.lt.s32.totalorder %v761, 96
        %v765 = vlaneseq
        %v766 = vshrl.u32 %v765, 7
        %v767 = vadd.s32 %v766, 8
        %vm768 = vcmp.eq.s32.totalorder %v766, 0
        %vm769 = vcmp.eq.s32.totalorder %v767, 0
        %vm770 = vcmp.eq.s32.totalorder %v766, 15
        %vm771 = vcmp.eq.s32.totalorder %v767, 15
        %v772 = vrot.slane %v503, 7
        %v773 = vrot.slane %v508, 7
        %v774 = vrot.slane %v513, 7
        %v775 = vrot.slane %v518, 7
        %v776 = vrot.slane %v523, 7
        %v777 = vrot.slane %v528, 7
        %v778 = vrot.slane %v533, 7
        %v779 = vrot.slane %v538, 7
        %v780 = vrot.slane %v543, 7
        %v781 = vrot.slane %v548, 7
        %v782 = vrot.slane %v553, 7
        %v783 = vrot.slane %v558, 7
        %v784 = vrot.slane %v563, 7
        %v785 = vrot.slane %v568, 7
        %v786 = vrot.slane %v573, 7
        %v787 = vrot.slane %v578, 7
        %v788 = vrot.slane %v505, 7
        %v789 = vrot.slane %v510, 7
        %v790 = vrot.slane %v515, 7
        %v791 = vrot.slane %v520, 7
        %v792 = vrot.slane %v525, 7
        %v793 = vrot.slane %v530, 7
        %v794 = vrot.slane %v535, 7
        %v795 = vrot.slane %v540, 7
        %v796 = vrot.slane %v545, 7
        %v797 = vrot.slane %v550, 7
        %v798 = vrot.slane %v555, 7
        %v799 = vrot.slane %v560, 7
        %v800 = vrot.slane %v565, 7
        %v801 = vrot.slane %v570, 7
        %v802 = vrot.slane %v575, 7
        %v803 = vrot.slane %v580, 7
        %vm804 = vcmp.lt.s32.totalorder %v766, 1
        %v805 = vsel %vm804, %v772, %v788
        %v806 = vsel %vm804, %v773, %v789
        %v807 = vsel %vm804, %v774, %v790
        %v808 = vsel %vm804, %v775, %v791
        %v809 = vsel %vm804, %v776, %v792
        %v810 = vsel %vm804, %v777, %v793
        %v811 = vsel %vm804, %v778, %v794
        %v812 = vsel %vm804, %v779, %v795
        %v813 = vsel %vm804, %v780, %v796
        %v814 = vsel %vm804, %v781, %v797
        %v815 = vsel %vm804, %v782, %v798
        %v816 = vsel %vm804, %v783, %v799
        %v817 = vsel %vm804, %v784, %v800
        %v818 = vsel %vm804, %v785, %v801
        %v819 = vsel %vm804, %v786, %v802
        %v820 = vsel %vm804, %v787, %v803
        %v821 = vsel %vm804, %v788, %v772
        %v822 = vsel %vm804, %v789, %v773
        %v823 = vsel %vm804, %v790, %v774
        %v824 = vsel %vm804, %v791, %v775
        %v825 = vsel %vm804, %v792, %v776
        %v826 = vsel %vm804, %v793, %v777
        %v827 = vsel %vm804, %v794, %v778
        %v828 = vsel %vm804, %v795, %v779
        %v829 = vsel %vm804, %v796, %v780
        %v830 = vsel %vm804, %v797, %v781
        %v831 = vsel %vm804, %v798, %v782
        %v832 = vsel %vm804, %v799, %v783
        %v833 = vsel %vm804, %v800, %v784
        %v834 = vsel %vm804, %v801, %v785
        %v835 = vsel %vm804, %v802, %v786
        %v836 = vsel %vm804, %v803, %v787
        %v837 = vsel %vm768, 1, 0
        %v838 = vsel %vm769, 1, 0
        %vm839 = vcmp.eq.s32.totalorder %v837, 1
        %vm840 = vcmp.eq.s32.totalorder %v838, 1
        %v841 = vsel %vm839, %v503, %v821
        %v842 = vsel %vm840, %v505, %v805
        %v843 = vsel %vm839, %v508, %v822
        %v844 = vsel %vm840, %v510, %v806
        %v845 = vsel %vm839, %v513, %v823
        %v846 = vsel %vm840, %v515, %v807
        %v847 = vsel %vm839, %v518, %v824
        %v848 = vsel %vm840, %v520, %v808
        %v849 = vsel %vm839, %v523, %v825
        %v850 = vsel %vm840, %v525, %v809
        %v851 = vsel %vm839, %v528, %v826
        %v852 = vsel %vm840, %v530, %v810
        %v853 = vsel %vm839, %v533, %v827
        %v854 = vsel %vm840, %v535, %v811
        %v855 = vsel %vm839, %v538, %v828
        %v856 = vsel %vm840, %v540, %v812
        %v857 = vsel %vm839, %v543, %v829
        %v858 = vsel %vm840, %v545, %v813
        %v859 = vsel %vm839, %v548, %v830
        %v860 = vsel %vm840, %v550, %v814
        %v861 = vsel %vm839, %v553, %v831
        %v862 = vsel %vm840, %v555, %v815
        %v863 = vsel %vm839, %v558, %v832
        %v864 = vsel %vm840, %v560, %v816
        %v865 = vsel %vm839, %v563, %v833
        %v866 = vsel %vm840, %v565, %v817
        %v867 = vsel %vm839, %v568, %v834
        %v868 = vsel %vm840, %v570, %v818
        %v869 = vsel %vm839, %v573, %v835
        %v870 = vsel %vm840, %v575, %v819
        %v871 = vsel %vm839, %v578, %v836
        %v872 = vsel %vm840, %v580, %v820
        %v873 = vrot.slane %v503, 1
        %v874 = vrot.slane %v508, 1
        %v875 = vrot.slane %v513, 1
        %v876 = vrot.slane %v518, 1
        %v877 = vrot.slane %v523, 1
        %v878 = vrot.slane %v528, 1
        %v879 = vrot.slane %v533, 1
        %v880 = vrot.slane %v538, 1
        %v881 = vrot.slane %v543, 1
        %v882 = vrot.slane %v548, 1
        %v883 = vrot.slane %v553, 1
        %v884 = vrot.slane %v558, 1
        %v885 = vrot.slane %v563, 1
        %v886 = vrot.slane %v568, 1
        %v887 = vrot.slane %v573, 1
        %v888 = vrot.slane %v578, 1
        %v889 = vrot.slane %v505, 1
        %v890 = vrot.slane %v510, 1
        %v891 = vrot.slane %v515, 1
        %v892 = vrot.slane %v520, 1
        %v893 = vrot.slane %v525, 1
        %v894 = vrot.slane %v530, 1
        %v895 = vrot.slane %v535, 1
        %v896 = vrot.slane %v540, 1
        %v897 = vrot.slane %v545, 1
        %v898 = vrot.slane %v550, 1
        %v899 = vrot.slane %v555, 1
        %v900 = vrot.slane %v560, 1
        %v901 = vrot.slane %v565, 1
        %v902 = vrot.slane %v570, 1
        %v903 = vrot.slane %v575, 1
        %v904 = vrot.slane %v580, 1
        %vm905 = vcmp.lt.s32.totalorder %v766, 7
        %v906 = vsel %vm905, %v873, %v889
        %v907 = vsel %vm905, %v874, %v890
        %v908 = vsel %vm905, %v875, %v891
        %v909 = vsel %vm905, %v876, %v892
        %v910 = vsel %vm905, %v877, %v893
        %v911 = vsel %vm905, %v878, %v894
        %v912 = vsel %vm905, %v879, %v895
        %v913 = vsel %vm905, %v880, %v896
        %v914 = vsel %vm905, %v881, %v897
        %v915 = vsel %vm905, %v882, %v898
        %v916 = vsel %vm905, %v883, %v899
        %v917 = vsel %vm905, %v884, %v900
        %v918 = vsel %vm905, %v885, %v901
        %v919 = vsel %vm905, %v886, %v902
        %v920 = vsel %vm905, %v887, %v903
        %v921 = vsel %vm905, %v888, %v904
        %v922 = vsel %vm905, %v889, %v873
        %v923 = vsel %vm905, %v890, %v874
        %v924 = vsel %vm905, %v891, %v875
        %v925 = vsel %vm905, %v892, %v876
        %v926 = vsel %vm905, %v893, %v877
        %v927 = vsel %vm905, %v894, %v878
        %v928 = vsel %vm905, %v895, %v879
        %v929 = vsel %vm905, %v896, %v880
        %v930 = vsel %vm905, %v897, %v881
        %v931 = vsel %vm905, %v898, %v882
        %v932 = vsel %vm905, %v899, %v883
        %v933 = vsel %vm905, %v900, %v884
        %v934 = vsel %vm905, %v901, %v885
        %v935 = vsel %vm905, %v902, %v886
        %v936 = vsel %vm905, %v903, %v887
        %v937 = vsel %vm905, %v904, %v888
        %v938 = vsel %vm770, 1, 0
        %v939 = vsel %vm771, 1, 0
        %vm940 = vcmp.eq.s32.totalorder %v938, 1
        %vm941 = vcmp.eq.s32.totalorder %v939, 1
        %v942 = vsel %vm940, %v503, %v906
        %v943 = vsel %vm941, %v505, %v922
        %v944 = vsel %vm940, %v508, %v907
        %v945 = vsel %vm941, %v510, %v923
        %v946 = vsel %vm940, %v513, %v908
        %v947 = vsel %vm941, %v515, %v924
        %v948 = vsel %vm940, %v518, %v909
        %v949 = vsel %vm941, %v520, %v925
        %v950 = vsel %vm940, %v523, %v910
        %v951 = vsel %vm941, %v525, %v926
        %v952 = vsel %vm940, %v528, %v911
        %v953 = vsel %vm941, %v530, %v927
        %v954 = vsel %vm940, %v533, %v912
        %v955 = vsel %vm941, %v535, %v928
        %v956 = vsel %vm940, %v538, %v913
        %v957 = vsel %vm941, %v540, %v929
        %v958 = vsel %vm940, %v543, %v914
        %v959 = vsel %vm941, %v545, %v930
        %v960 = vsel %vm940, %v548, %v915
        %v961 = vsel %vm941, %v550, %v931
        %v962 = vsel %vm940, %v553, %v916
        %v963 = vsel %vm941, %v555, %v932
        %v964 = vsel %vm940, %v558, %v917
        %v965 = vsel %vm941, %v560, %v933
        %v966 = vsel %vm940, %v563, %v918
        %v967 = vsel %vm941, %v565, %v934
        %v968 = vsel %vm940, %v568, %v919
        %v969 = vsel %vm941, %v570, %v935
        %v970 = vsel %vm940, %v573, %v920
        %v971 = vsel %vm941, %v575, %v936
        %v972 = vsel %vm940, %v578, %v921
        %v973 = vsel %vm941, %v580, %v937
        %v974 = vsel %vm764, 1, 0
        %vm975 = vcmp.eq.s32.totalorder %v974, 1
        %v976 = vsel %vm975, %v841, %v942
        %v977 = vsel %vm975, %v842, %v943
        %v978 = vsel %vm975, %v843, %v944
        %v979 = vsel %vm975, %v844, %v945
        %v980 = vsel %vm975, %v845, %v946
        %v981 = vsel %vm975, %v846, %v947
        %v982 = vsel %vm975, %v847, %v948
        %v983 = vsel %vm975, %v848, %v949
        %v984 = vsel %vm975, %v849, %v950
        %v985 = vsel %vm975, %v850, %v951
        %v986 = vsel %vm975, %v851, %v952
        %v987 = vsel %vm975, %v852, %v953
        %v988 = vsel %vm975, %v853, %v954
        %v989 = vsel %vm975, %v854, %v955
        %v990 = vsel %vm975, %v855, %v956
        %v991 = vsel %vm975, %v856, %v957
        %v992 = vsel %vm975, %v857, %v958
        %v993 = vsel %vm975, %v858, %v959
        %v994 = vsel %vm975, %v859, %v960
        %v995 = vsel %vm975, %v860, %v961
        %v996 = vsel %vm975, %v861, %v962
        %v997 = vsel %vm975, %v862, %v963
        %v998 = vsel %vm975, %v863, %v964
        %v999 = vsel %vm975, %v864, %v965
        %v1000 = vsel %vm975, %v865, %v966
        %v1001 = vsel %vm975, %v866, %v967
        %v1002 = vsel %vm975, %v867, %v968
        %v1003 = vsel %vm975, %v868, %v969
        %v1004 = vsel %vm975, %v869, %v970
        %v1005 = vsel %vm975, %v870, %v971
        %v1006 = vsel %vm975, %v871, %v972
        %v1007 = vsel %vm975, %v872, %v973
        %v1008 = vsel %vm763, 1, 0
        %vm1009 = vcmp.eq.s32.totalorder %v1008, 1
        %v1010 = vsel %vm1009, %v508, %v976
        %v1011 = vsel %vm1009, %v510, %v977
        %v1012 = vsel %vm1009, %v513, %v978
        %v1013 = vsel %vm1009, %v515, %v979
        %v1014 = vsel %vm1009, %v518, %v980
        %v1015 = vsel %vm1009, %v520, %v981
        %v1016 = vsel %vm1009, %v523, %v982
        %v1017 = vsel %vm1009, %v525, %v983
        %v1018 = vsel %vm1009, %v528, %v984
        %v1019 = vsel %vm1009, %v530, %v985
        %v1020 = vsel %vm1009, %v533, %v986
        %v1021 = vsel %vm1009, %v535, %v987
        %v1022 = vsel %vm1009, %v538, %v988
        %v1023 = vsel %vm1009, %v540, %v989
        %v1024 = vsel %vm1009, %v543, %v990
        %v1025 = vsel %vm1009, %v545, %v991
        %v1026 = vsel %vm1009, %v548, %v992
        %v1027 = vsel %vm1009, %v550, %v993
        %v1028 = vsel %vm1009, %v553, %v994
        %v1029 = vsel %vm1009, %v555, %v995
        %v1030 = vsel %vm1009, %v558, %v996
        %v1031 = vsel %vm1009, %v560, %v997
        %v1032 = vsel %vm1009, %v563, %v998
        %v1033 = vsel %vm1009, %v565, %v999
        %v1034 = vsel %vm1009, %v568, %v1000
        %v1035 = vsel %vm1009, %v570, %v1001
        %v1036 = vsel %vm1009, %v573, %v1002
        %v1037 = vsel %vm1009, %v575, %v1003
        %v1038 = vsel %vm1009, %v578, %v1004
        %v1039 = vsel %vm1009, %v580, %v1005
        %v1040 = vsel %vm1009, %v578, %v1006
        %v1041 = vsel %vm1009, %v580, %v1007
        %v1042 = vsel %vm762, 1, 0
        %vm1043 = vcmp.eq.s32.totalorder %v1042, 1
        %v1044 = vsel %vm1043, %v503, %v1010
        %v1045 = vsel %vm1043, %v505, %v1011
        %v1046 = vsel %vm1043, %v503, %v1012
        %v1047 = vsel %vm1043, %v505, %v1013
        %v1048 = vsel %vm1043, %v508, %v1014
        %v1049 = vsel %vm1043, %v510, %v1015
        %v1050 = vsel %vm1043, %v513, %v1016
        %v1051 = vsel %vm1043, %v515, %v1017
        %v1052 = vsel %vm1043, %v518, %v1018
        %v1053 = vsel %vm1043, %v520, %v1019
        %v1054 = vsel %vm1043, %v523, %v1020
        %v1055 = vsel %vm1043, %v525, %v1021
        %v1056 = vsel %vm1043, %v528, %v1022
        %v1057 = vsel %vm1043, %v530, %v1023
        %v1058 = vsel %vm1043, %v533, %v1024
        %v1059 = vsel %vm1043, %v535, %v1025
        %v1060 = vsel %vm1043, %v538, %v1026
        %v1061 = vsel %vm1043, %v540, %v1027
        %v1062 = vsel %vm1043, %v543, %v1028
        %v1063 = vsel %vm1043, %v545, %v1029
        %v1064 = vsel %vm1043, %v548, %v1030
        %v1065 = vsel %vm1043, %v550, %v1031
        %v1066 = vsel %vm1043, %v553, %v1032
        %v1067 = vsel %vm1043, %v555, %v1033
        %v1068 = vsel %vm1043, %v558, %v1034
        %v1069 = vsel %vm1043, %v560, %v1035
        %v1070 = vsel %vm1043, %v563, %v1036
        %v1071 = vsel %vm1043, %v565, %v1037
        %v1072 = vsel %vm1043, %v568, %v1038
        %v1073 = vsel %vm1043, %v570, %v1039
        %v1074 = vsel %vm1043, %v573, %v1040
        %v1075 = vsel %vm1043, %v575, %v1041
        %v1076 = vrot.slane %v592, 7
        %v1077 = vrot.slane %v597, 7
        %v1078 = vrot.slane %v602, 7
        %v1079 = vrot.slane %v607, 7
        %v1080 = vrot.slane %v612, 7
        %v1081 = vrot.slane %v617, 7
        %v1082 = vrot.slane %v622, 7
        %v1083 = vrot.slane %v627, 7
        %v1084 = vrot.slane %v632, 7
        %v1085 = vrot.slane %v637, 7
        %v1086 = vrot.slane %v642, 7
        %v1087 = vrot.slane %v647, 7
        %v1088 = vrot.slane %v652, 7
        %v1089 = vrot.slane %v657, 7
        %v1090 = vrot.slane %v662, 7
        %v1091 = vrot.slane %v667, 7
        %v1092 = vrot.slane %v594, 7
        %v1093 = vrot.slane %v599, 7
        %v1094 = vrot.slane %v604, 7
        %v1095 = vrot.slane %v609, 7
        %v1096 = vrot.slane %v614, 7
        %v1097 = vrot.slane %v619, 7
        %v1098 = vrot.slane %v624, 7
        %v1099 = vrot.slane %v629, 7
        %v1100 = vrot.slane %v634, 7
        %v1101 = vrot.slane %v639, 7
        %v1102 = vrot.slane %v644, 7
        %v1103 = vrot.slane %v649, 7
        %v1104 = vrot.slane %v654, 7
        %v1105 = vrot.slane %v659, 7
        %v1106 = vrot.slane %v664, 7
        %v1107 = vrot.slane %v669, 7
        %v1108 = vsel %vm804, %v1076, %v1092
        %v1109 = vsel %vm804, %v1077, %v1093
        %v1110 = vsel %vm804, %v1078, %v1094
        %v1111 = vsel %vm804, %v1079, %v1095
        %v1112 = vsel %vm804, %v1080, %v1096
        %v1113 = vsel %vm804, %v1081, %v1097
        %v1114 = vsel %vm804, %v1082, %v1098
        %v1115 = vsel %vm804, %v1083, %v1099
        %v1116 = vsel %vm804, %v1084, %v1100
        %v1117 = vsel %vm804, %v1085, %v1101
        %v1118 = vsel %vm804, %v1086, %v1102
        %v1119 = vsel %vm804, %v1087, %v1103
        %v1120 = vsel %vm804, %v1088, %v1104
        %v1121 = vsel %vm804, %v1089, %v1105
        %v1122 = vsel %vm804, %v1090, %v1106
        %v1123 = vsel %vm804, %v1091, %v1107
        %v1124 = vsel %vm804, %v1092, %v1076
        %v1125 = vsel %vm804, %v1093, %v1077
        %v1126 = vsel %vm804, %v1094, %v1078
        %v1127 = vsel %vm804, %v1095, %v1079
        %v1128 = vsel %vm804, %v1096, %v1080
        %v1129 = vsel %vm804, %v1097, %v1081
        %v1130 = vsel %vm804, %v1098, %v1082
        %v1131 = vsel %vm804, %v1099, %v1083
        %v1132 = vsel %vm804, %v1100, %v1084
        %v1133 = vsel %vm804, %v1101, %v1085
        %v1134 = vsel %vm804, %v1102, %v1086
        %v1135 = vsel %vm804, %v1103, %v1087
        %v1136 = vsel %vm804, %v1104, %v1088
        %v1137 = vsel %vm804, %v1105, %v1089
        %v1138 = vsel %vm804, %v1106, %v1090
        %v1139 = vsel %vm804, %v1107, %v1091
        %v1140 = vsel %vm839, %v592, %v1124
        %v1141 = vsel %vm840, %v594, %v1108
        %v1142 = vsel %vm839, %v597, %v1125
        %v1143 = vsel %vm840, %v599, %v1109
        %v1144 = vsel %vm839, %v602, %v1126
        %v1145 = vsel %vm840, %v604, %v1110
        %v1146 = vsel %vm839, %v607, %v1127
        %v1147 = vsel %vm840, %v609, %v1111
        %v1148 = vsel %vm839, %v612, %v1128
        %v1149 = vsel %vm840, %v614, %v1112
        %v1150 = vsel %vm839, %v617, %v1129
        %v1151 = vsel %vm840, %v619, %v1113
        %v1152 = vsel %vm839, %v622, %v1130
        %v1153 = vsel %vm840, %v624, %v1114
        %v1154 = vsel %vm839, %v627, %v1131
        %v1155 = vsel %vm840, %v629, %v1115
        %v1156 = vsel %vm839, %v632, %v1132
        %v1157 = vsel %vm840, %v634, %v1116
        %v1158 = vsel %vm839, %v637, %v1133
        %v1159 = vsel %vm840, %v639, %v1117
        %v1160 = vsel %vm839, %v642, %v1134
        %v1161 = vsel %vm840, %v644, %v1118
        %v1162 = vsel %vm839, %v647, %v1135
        %v1163 = vsel %vm840, %v649, %v1119
        %v1164 = vsel %vm839, %v652, %v1136
        %v1165 = vsel %vm840, %v654, %v1120
        %v1166 = vsel %vm839, %v657, %v1137
        %v1167 = vsel %vm840, %v659, %v1121
        %v1168 = vsel %vm839, %v662, %v1138
        %v1169 = vsel %vm840, %v664, %v1122
        %v1170 = vsel %vm839, %v667, %v1139
        %v1171 = vsel %vm840, %v669, %v1123
        %v1172 = vrot.slane %v592, 1
        %v1173 = vrot.slane %v597, 1
        %v1174 = vrot.slane %v602, 1
        %v1175 = vrot.slane %v607, 1
        %v1176 = vrot.slane %v612, 1
        %v1177 = vrot.slane %v617, 1
        %v1178 = vrot.slane %v622, 1
        %v1179 = vrot.slane %v627, 1
        %v1180 = vrot.slane %v632, 1
        %v1181 = vrot.slane %v637, 1
        %v1182 = vrot.slane %v642, 1
        %v1183 = vrot.slane %v647, 1
        %v1184 = vrot.slane %v652, 1
        %v1185 = vrot.slane %v657, 1
        %v1186 = vrot.slane %v662, 1
        %v1187 = vrot.slane %v667, 1
        %v1188 = vrot.slane %v594, 1
        %v1189 = vrot.slane %v599, 1
        %v1190 = vrot.slane %v604, 1
        %v1191 = vrot.slane %v609, 1
        %v1192 = vrot.slane %v614, 1
        %v1193 = vrot.slane %v619, 1
        %v1194 = vrot.slane %v624, 1
        %v1195 = vrot.slane %v629, 1
        %v1196 = vrot.slane %v634, 1
        %v1197 = vrot.slane %v639, 1
        %v1198 = vrot.slane %v644, 1
        %v1199 = vrot.slane %v649, 1
        %v1200 = vrot.slane %v654, 1
        %v1201 = vrot.slane %v659, 1
        %v1202 = vrot.slane %v664, 1
        %v1203 = vrot.slane %v669, 1
        %v1204 = vsel %vm905, %v1172, %v1188
        %v1205 = vsel %vm905, %v1173, %v1189
        %v1206 = vsel %vm905, %v1174, %v1190
        %v1207 = vsel %vm905, %v1175, %v1191
        %v1208 = vsel %vm905, %v1176, %v1192
        %v1209 = vsel %vm905, %v1177, %v1193
        %v1210 = vsel %vm905, %v1178, %v1194
        %v1211 = vsel %vm905, %v1179, %v1195
        %v1212 = vsel %vm905, %v1180, %v1196
        %v1213 = vsel %vm905, %v1181, %v1197
        %v1214 = vsel %vm905, %v1182, %v1198
        %v1215 = vsel %vm905, %v1183, %v1199
        %v1216 = vsel %vm905, %v1184, %v1200
        %v1217 = vsel %vm905, %v1185, %v1201
        %v1218 = vsel %vm905, %v1186, %v1202
        %v1219 = vsel %vm905, %v1187, %v1203
        %v1220 = vsel %vm905, %v1188, %v1172
        %v1221 = vsel %vm905, %v1189, %v1173
        %v1222 = vsel %vm905, %v1190, %v1174
        %v1223 = vsel %vm905, %v1191, %v1175
        %v1224 = vsel %vm905, %v1192, %v1176
        %v1225 = vsel %vm905, %v1193, %v1177
        %v1226 = vsel %vm905, %v1194, %v1178
        %v1227 = vsel %vm905, %v1195, %v1179
        %v1228 = vsel %vm905, %v1196, %v1180
        %v1229 = vsel %vm905, %v1197, %v1181
        %v1230 = vsel %vm905, %v1198, %v1182
        %v1231 = vsel %vm905, %v1199, %v1183
        %v1232 = vsel %vm905, %v1200, %v1184
        %v1233 = vsel %vm905, %v1201, %v1185
        %v1234 = vsel %vm905, %v1202, %v1186
        %v1235 = vsel %vm905, %v1203, %v1187
        %v1236 = vsel %vm940, %v592, %v1204
        %v1237 = vsel %vm941, %v594, %v1220
        %v1238 = vsel %vm940, %v597, %v1205
        %v1239 = vsel %vm941, %v599, %v1221
        %v1240 = vsel %vm940, %v602, %v1206
        %v1241 = vsel %vm941, %v604, %v1222
        %v1242 = vsel %vm940, %v607, %v1207
        %v1243 = vsel %vm941, %v609, %v1223
        %v1244 = vsel %vm940, %v612, %v1208
        %v1245 = vsel %vm941, %v614, %v1224
        %v1246 = vsel %vm940, %v617, %v1209
        %v1247 = vsel %vm941, %v619, %v1225
        %v1248 = vsel %vm940, %v622, %v1210
        %v1249 = vsel %vm941, %v624, %v1226
        %v1250 = vsel %vm940, %v627, %v1211
        %v1251 = vsel %vm941, %v629, %v1227
        %v1252 = vsel %vm940, %v632, %v1212
        %v1253 = vsel %vm941, %v634, %v1228
        %v1254 = vsel %vm940, %v637, %v1213
        %v1255 = vsel %vm941, %v639, %v1229
        %v1256 = vsel %vm940, %v642, %v1214
        %v1257 = vsel %vm941, %v644, %v1230
        %v1258 = vsel %vm940, %v647, %v1215
        %v1259 = vsel %vm941, %v649, %v1231
        %v1260 = vsel %vm940, %v652, %v1216
        %v1261 = vsel %vm941, %v654, %v1232
        %v1262 = vsel %vm940, %v657, %v1217
        %v1263 = vsel %vm941, %v659, %v1233
        %v1264 = vsel %vm940, %v662, %v1218
        %v1265 = vsel %vm941, %v664, %v1234
        %v1266 = vsel %vm940, %v667, %v1219
        %v1267 = vsel %vm941, %v669, %v1235
        %v1268 = vsel %vm975, %v592, %v597
        %v1269 = vsel %vm975, %v594, %v599
        %v1270 = vsel %vm975, %v592, %v602
        %v1271 = vsel %vm975, %v594, %v604
        %v1272 = vsel %vm975, %v597, %v607
        %v1273 = vsel %vm975, %v599, %v609
        %v1274 = vsel %vm975, %v602, %v612
        %v1275 = vsel %vm975, %v604, %v614
        %v1276 = vsel %vm975, %v607, %v617
        %v1277 = vsel %vm975, %v609, %v619
        %v1278 = vsel %vm975, %v612, %v622
        %v1279 = vsel %vm975, %v614, %v624
        %v1280 = vsel %vm975, %v617, %v627
        %v1281 = vsel %vm975, %v619, %v629
        %v1282 = vsel %vm975, %v622, %v632
        %v1283 = vsel %vm975, %v624, %v634
        %v1284 = vsel %vm975, %v627, %v637
        %v1285 = vsel %vm975, %v629, %v639
        %v1286 = vsel %vm975, %v632, %v642
        %v1287 = vsel %vm975, %v634, %v644
        %v1288 = vsel %vm975, %v637, %v647
        %v1289 = vsel %vm975, %v639, %v649
        %v1290 = vsel %vm975, %v642, %v652
        %v1291 = vsel %vm975, %v644, %v654
        %v1292 = vsel %vm975, %v647, %v657
        %v1293 = vsel %vm975, %v649, %v659
        %v1294 = vsel %vm975, %v652, %v662
        %v1295 = vsel %vm975, %v654, %v664
        %v1296 = vsel %vm975, %v657, %v667
        %v1297 = vsel %vm975, %v659, %v669
        %v1298 = vsel %vm975, %v662, %v667
        %v1299 = vsel %vm975, %v664, %v669
        %v1300 = vsel %vm1009, %v1236, %v1268
        %v1301 = vsel %vm1009, %v1237, %v1269
        %v1302 = vsel %vm1009, %v1238, %v1270
        %v1303 = vsel %vm1009, %v1239, %v1271
        %v1304 = vsel %vm1009, %v1240, %v1272
        %v1305 = vsel %vm1009, %v1241, %v1273
        %v1306 = vsel %vm1009, %v1242, %v1274
        %v1307 = vsel %vm1009, %v1243, %v1275
        %v1308 = vsel %vm1009, %v1244, %v1276
        %v1309 = vsel %vm1009, %v1245, %v1277
        %v1310 = vsel %vm1009, %v1246, %v1278
        %v1311 = vsel %vm1009, %v1247, %v1279
        %v1312 = vsel %vm1009, %v1248, %v1280
        %v1313 = vsel %vm1009, %v1249, %v1281
        %v1314 = vsel %vm1009, %v1250, %v1282
        %v1315 = vsel %vm1009, %v1251, %v1283
        %v1316 = vsel %vm1009, %v1252, %v1284
        %v1317 = vsel %vm1009, %v1253, %v1285
        %v1318 = vsel %vm1009, %v1254, %v1286
        %v1319 = vsel %vm1009, %v1255, %v1287
        %v1320 = vsel %vm1009, %v1256, %v1288
        %v1321 = vsel %vm1009, %v1257, %v1289
        %v1322 = vsel %vm1009, %v1258, %v1290
        %v1323 = vsel %vm1009, %v1259, %v1291
        %v1324 = vsel %vm1009, %v1260, %v1292
        %v1325 = vsel %vm1009, %v1261, %v1293
        %v1326 = vsel %vm1009, %v1262, %v1294
        %v1327 = vsel %vm1009, %v1263, %v1295
        %v1328 = vsel %vm1009, %v1264, %v1296
        %v1329 = vsel %vm1009, %v1265, %v1297
        %v1330 = vsel %vm1009, %v1266, %v1298
        %v1331 = vsel %vm1009, %v1267, %v1299
        %v1332 = vsel %vm1043, %v1140, %v1300
        %v1333 = vsel %vm1043, %v1141, %v1301
        %v1334 = vsel %vm1043, %v1142, %v1302
        %v1335 = vsel %vm1043, %v1143, %v1303
        %v1336 = vsel %vm1043, %v1144, %v1304
        %v1337 = vsel %vm1043, %v1145, %v1305
        %v1338 = vsel %vm1043, %v1146, %v1306
        %v1339 = vsel %vm1043, %v1147, %v1307
        %v1340 = vsel %vm1043, %v1148, %v1308
        %v1341 = vsel %vm1043, %v1149, %v1309
        %v1342 = vsel %vm1043, %v1150, %v1310
        %v1343 = vsel %vm1043, %v1151, %v1311
        %v1344 = vsel %vm1043, %v1152, %v1312
        %v1345 = vsel %vm1043, %v1153, %v1313
        %v1346 = vsel %vm1043, %v1154, %v1314
        %v1347 = vsel %vm1043, %v1155, %v1315
        %v1348 = vsel %vm1043, %v1156, %v1316
        %v1349 = vsel %vm1043, %v1157, %v1317
        %v1350 = vsel %vm1043, %v1158, %v1318
        %v1351 = vsel %vm1043, %v1159, %v1319
        %v1352 = vsel %vm1043, %v1160, %v1320
        %v1353 = vsel %vm1043, %v1161, %v1321
        %v1354 = vsel %vm1043, %v1162, %v1322
        %v1355 = vsel %vm1043, %v1163, %v1323
        %v1356 = vsel %vm1043, %v1164, %v1324
        %v1357 = vsel %vm1043, %v1165, %v1325
        %v1358 = vsel %vm1043, %v1166, %v1326
        %v1359 = vsel %vm1043, %v1167, %v1327
        %v1360 = vsel %vm1043, %v1168, %v1328
        %v1361 = vsel %vm1043, %v1169, %v1329
        %v1362 = vsel %vm1043, %v1170, %v1330
        %v1363 = vsel %vm1043, %v1171, %v1331
        %v1364 = vadd.f32 %v1044, %v1332
        %v1365 = vadd.f32 %v1045, %v1333
        %v1366 = vadd.f32 %v1046, %v1334
        %v1367 = vadd.f32 %v1047, %v1335
        %v1368 = vadd.f32 %v1048, %v1336
        %v1369 = vadd.f32 %v1049, %v1337
        %v1370 = vadd.f32 %v1050, %v1338
        %v1371 = vadd.f32 %v1051, %v1339
        %v1372 = vadd.f32 %v1052, %v1340
        %v1373 = vadd.f32 %v1053, %v1341
        %v1374 = vadd.f32 %v1054, %v1342
        %v1375 = vadd.f32 %v1055, %v1343
        %v1376 = vadd.f32 %v1056, %v1344
        %v1377 = vadd.f32 %v1057, %v1345
        %v1378 = vadd.f32 %v1058, %v1346
        %v1379 = vadd.f32 %v1059, %v1347
        %v1380 = vadd.f32 %v1060, %v1348
        %v1381 = vadd.f32 %v1061, %v1349
        %v1382 = vadd.f32 %v1062, %v1350
        %v1383 = vadd.f32 %v1063, %v1351
        %v1384 = vadd.f32 %v1064, %v1352
        %v1385 = vadd.f32 %v1065, %v1353
        %v1386 = vadd.f32 %v1066, %v1354
        %v1387 = vadd.f32 %v1067, %v1355
        %v1388 = vadd.f32 %v1068, %v1356
        %v1389 = vadd.f32 %v1069, %v1357
        %v1390 = vadd.f32 %v1070, %v1358
        %v1391 = vadd.f32 %v1071, %v1359
        %v1392 = vadd.f32 %v1072, %v1360
        %v1393 = vadd.f32 %v1073, %v1361
        %v1394 = vadd.f32 %v1074, %v1362
        %v1395 = vadd.f32 %v1075, %v1363
        %v1396 = vadd.f32 %v1364, %v681
        %v1397 = vadd.f32 %v1365, %v683
        %v1398 = vadd.f32 %v1366, %v686
        %v1399 = vadd.f32 %v1367, %v688
        %v1400 = vadd.f32 %v1368, %v691
        %v1401 = vadd.f32 %v1369, %v693
        %v1402 = vadd.f32 %v1370, %v696
        %v1403 = vadd.f32 %v1371, %v698
        %v1404 = vadd.f32 %v1372, %v701
        %v1405 = vadd.f32 %v1373, %v703
        %v1406 = vadd.f32 %v1374, %v706
        %v1407 = vadd.f32 %v1375, %v708
        %v1408 = vadd.f32 %v1376, %v711
        %v1409 = vadd.f32 %v1377, %v713
        %v1410 = vadd.f32 %v1378, %v716
        %v1411 = vadd.f32 %v1379, %v718
        %v1412 = vadd.f32 %v1380, %v721
        %v1413 = vadd.f32 %v1381, %v723
        %v1414 = vadd.f32 %v1382, %v726
        %v1415 = vadd.f32 %v1383, %v728
        %v1416 = vadd.f32 %v1384, %v731
        %v1417 = vadd.f32 %v1385, %v733
        %v1418 = vadd.f32 %v1386, %v736
        %v1419 = vadd.f32 %v1387, %v738
        %v1420 = vadd.f32 %v1388, %v741
        %v1421 = vadd.f32 %v1389, %v743
        %v1422 = vadd.f32 %v1390, %v746
        %v1423 = vadd.f32 %v1391, %v748
        %v1424 = vadd.f32 %v1392, %v751
        %v1425 = vadd.f32 %v1393, %v753
        %v1426 = vadd.f32 %v1394, %v756
        %v1427 = vadd.f32 %v1395, %v758
        %v1428 = vadd.f32 %v1396, %v1397
        %v1429 = vadd.f32 %v1428, %v1398
        %v1430 = vadd.f32 %v1429, %v1399
        %v1431 = vadd.f32 %v1430, %v1400
        %v1432 = vadd.f32 %v1431, %v1401
        %v1433 = vadd.f32 %v1432, %v1402
        %v1434 = vadd.f32 %v1433, %v1403
        %v1435 = vadd.f32 %v1434, %v1404
        %v1436 = vadd.f32 %v1435, %v1405
        %v1437 = vadd.f32 %v1436, %v1406
        %v1438 = vadd.f32 %v1437, %v1407
        %v1439 = vadd.f32 %v1438, %v1408
        %v1440 = vadd.f32 %v1439, %v1409
        %v1441 = vadd.f32 %v1440, %v1410
        %v1442 = vadd.f32 %v1441, %v1411
        %v1443 = vadd.f32 %v1442, %v1412
        %v1444 = vadd.f32 %v1443, %v1413
        %v1445 = vadd.f32 %v1444, %v1414
        %v1446 = vadd.f32 %v1445, %v1415
        %v1447 = vadd.f32 %v1446, %v1416
        %v1448 = vadd.f32 %v1447, %v1417
        %v1449 = vadd.f32 %v1448, %v1418
        %v1450 = vadd.f32 %v1449, %v1419
        %v1451 = vadd.f32 %v1450, %v1420
        %v1452 = vadd.f32 %v1451, %v1421
        %v1453 = vadd.f32 %v1452, %v1422
        %v1454 = vadd.f32 %v1453, %v1423
        %v1455 = vadd.f32 %v1454, %v1424
        %v1456 = vadd.f32 %v1455, %v1425
        %v1457 = vadd.f32 %v1456, %v1426
        %v1458 = vadd.f32 %v1457, %v1427
        %v1459 = vrot.slane %v1458, 4
        %v1460 = vadd.f32 %v1458, %v1459
        %v1461 = vrot.slane %v1460, 2
        %v1462 = vadd.f32 %v1460, %v1461
        %v1463 = vrot.slane %v1462, 1
        %v1464 = vadd.f32 %v1462, %v1463
        %v1465 = vld [vmem:[%s3] sm:$0xff]
        %v1466 = vld [vmem:[%s3 + $0x8] sm:$0xff]
        %v1467 = vld [vmem:[%s3 + $0x10] sm:$0xff]
        %v1468 = vld [vmem:[%s3 + $0x18] sm:$0xff]
        %v1469 = vld [vmem:[%s3 + $0x20] sm:$0xff]
        %v1470 = vld [vmem:[%s3 + $0x28] sm:$0xff]
        %v1471 = vld [vmem:[%s3 + $0x30] sm:$0xff]
        %v1472 = vld [vmem:[%s3 + $0x38] sm:$0xff]
        %v1473 = vld [vmem:[%s3 + $0x40] sm:$0xff]
        %v1474 = vld [vmem:[%s3 + $0x48] sm:$0xff]
        %v1475 = vld [vmem:[%s3 + $0x50] sm:$0xff]
        %v1476 = vld [vmem:[%s3 + $0x58] sm:$0xff]
        %v1477 = vld [vmem:[%s3 + $0x60] sm:$0xff]
        %v1478 = vld [vmem:[%s3 + $0x68] sm:$0xff]
        %v1479 = vld [vmem:[%s3 + $0x70] sm:$0xff]
        %v1480 = vld [vmem:[%s3 + $0x78] sm:$0xff]
        %1481 = vmatpush.msra.mxu0 %v1480
        %1482 = vmatpush.msra.mxu0 %v1479
        %1483 = vmatpush.msra.mxu0 %v1478
        %1484 = vmatpush.msra.mxu0 %v1477
        %1485 = vmatpush.msra.mxu0 %v1476
        %1486 = vmatpush.msra.mxu0 %v1475
        %1487 = vmatpush.msra.mxu0 %v1474
        %1488 = vmatpush.msra.mxu0 %v1473
        %1489 = vmatpush.msra.mxu0 %v1472
        %1490 = vmatpush.msra.mxu0 %v1471
        %1491 = vmatpush.msra.mxu0 %v1470
        %1492 = vmatpush.msra.mxu0 %v1469
        %1493 = vmatpush.msra.mxu0 %v1468
        %1494 = vmatpush.msra.mxu0 %v1467
        %1495 = vmatpush.msra.mxu0 %v1466
        %1496 = vmatpush.msra.mxu0 %v1465
        %1497 = vmatmul.f32.gmra.mxu0 %v1464
        %v1498 = vpop.f32.mrf.mxu0
        %v1499 = vadd.f32 0.0, %v1498
        %1500 = vdwg.mxu0
        %v1501 = vmul.f32 %v1499, 0.5
        %v1502 = vmul.f32 %v1499, 0.044715
        %v1503 = vmul.f32 %v1502, %v1499
        %v1504 = vmul.f32 %v1503, %v1499
        %v1505 = vadd.f32 %v1499, %v1504
        %v1506 = vmul.f32 %v1505, 0.7978846
        %v1507 = vtanh.pop %v1506
        %v1508 = vadd.f32 %v1507, 1.0
        %v1509 = vmul.f32 %v1501, %v1508
        %v1510 = vld [vmem:[%s4] sm:$0xff]
        %v1511 = vld [vmem:[%s4 + $0x8] sm:$0xff]
        %v1512 = vld [vmem:[%s4 + $0x10] sm:$0xff]
        %v1513 = vld [vmem:[%s4 + $0x18] sm:$0xff]
        %v1514 = vld [vmem:[%s4 + $0x20] sm:$0xff]
        %v1515 = vld [vmem:[%s4 + $0x28] sm:$0xff]
        %v1516 = vld [vmem:[%s4 + $0x30] sm:$0xff]
        %v1517 = vld [vmem:[%s4 + $0x38] sm:$0xff]
        %v1518 = vld [vmem:[%s4 + $0x40] sm:$0xff]
        %v1519 = vld [vmem:[%s4 + $0x48] sm:$0xff]
        %v1520 = vld [vmem:[%s4 + $0x50] sm:$0xff]
        %v1521 = vld [vmem:[%s4 + $0x58] sm:$0xff]
        %v1522 = vld [vmem:[%s4 + $0x60] sm:$0xff]
        %v1523 = vld [vmem:[%s4 + $0x68] sm:$0xff]
        %v1524 = vld [vmem:[%s4 + $0x70] sm:$0xff]
        %v1525 = vld [vmem:[%s4 + $0x78] sm:$0xff]
        %v1526 = vld [vmem:[%s4 + $0x80] sm:$0xff]
        %v1527 = vld [vmem:[%s4 + $0x88] sm:$0xff]
        %v1528 = vld [vmem:[%s4 + $0x90] sm:$0xff]
        %v1529 = vld [vmem:[%s4 + $0x98] sm:$0xff]
        %v1530 = vld [vmem:[%s4 + $0xa0] sm:$0xff]
        %v1531 = vld [vmem:[%s4 + $0xa8] sm:$0xff]
        %v1532 = vld [vmem:[%s4 + $0xb0] sm:$0xff]
        %v1533 = vld [vmem:[%s4 + $0xb8] sm:$0xff]
        %v1534 = vld [vmem:[%s4 + $0xc0] sm:$0xff]
        %v1535 = vld [vmem:[%s4 + $0xc8] sm:$0xff]
        %v1536 = vld [vmem:[%s4 + $0xd0] sm:$0xff]
        %v1537 = vld [vmem:[%s4 + $0xd8] sm:$0xff]
        %v1538 = vld [vmem:[%s4 + $0xe0] sm:$0xff]
        %v1539 = vld [vmem:[%s4 + $0xe8] sm:$0xff]
        %v1540 = vld [vmem:[%s4 + $0xf0] sm:$0xff]
        %v1541 = vld [vmem:[%s4 + $0xf8] sm:$0xff]
        %v1542 = vld [vmem:[%s4 + $0x100] sm:$0xff]
        %v1543 = vld [vmem:[%s4 + $0x108] sm:$0xff]
        %v1544 = vld [vmem:[%s4 + $0x110] sm:$0xff]
        %v1545 = vld [vmem:[%s4 + $0x118] sm:$0xff]
        %v1546 = vld [vmem:[%s4 + $0x120] sm:$0xff]
        %v1547 = vld [vmem:[%s4 + $0x128] sm:$0xff]
        %v1548 = vld [vmem:[%s4 + $0x130] sm:$0xff]
        %v1549 = vld [vmem:[%s4 + $0x138] sm:$0xff]
        %v1550 = vld [vmem:[%s4 + $0x140] sm:$0xff]
        %v1551 = vld [vmem:[%s4 + $0x148] sm:$0xff]
        %v1552 = vld [vmem:[%s4 + $0x150] sm:$0xff]
        %v1553 = vld [vmem:[%s4 + $0x158] sm:$0xff]
        %v1554 = vld [vmem:[%s4 + $0x160] sm:$0xff]
        %v1555 = vld [vmem:[%s4 + $0x168] sm:$0xff]
        %v1556 = vld [vmem:[%s4 + $0x170] sm:$0xff]
        %v1557 = vld [vmem:[%s4 + $0x178] sm:$0xff]
        %1558 = vmatpush.msra.mxu0 %v1555
        %1559 = vmatpush.msra.mxu0 %v1552
        %1560 = vmatpush.msra.mxu0 %v1549
        %1561 = vmatpush.msra.mxu0 %v1546
        %1562 = vmatpush.msra.mxu0 %v1543
        %1563 = vmatpush.msra.mxu0 %v1540
        %1564 = vmatpush.msra.mxu0 %v1537
        %1565 = vmatpush.msra.mxu0 %v1534
        %1566 = vmatpush.msra.mxu0 %v1531
        %1567 = vmatpush.msra.mxu0 %v1528
        %1568 = vmatpush.msra.mxu0 %v1525
        %1569 = vmatpush.msra.mxu0 %v1522
        %1570 = vmatpush.msra.mxu0 %v1519
        %1571 = vmatpush.msra.mxu0 %v1516
        %1572 = vmatpush.msra.mxu0 %v1513
        %1573 = vmatpush.msra.mxu0 %v1510
        %1574 = vmatmul.f32.gmra.mxu0 %v1509
        %v1575 = vpop.f32.mrf.mxu0
        %v1576 = vadd.f32 0.0, %v1575
        %1577 = vdwg.mxu0
        %1578 = vmatpush.msra.mxu0 %v1556
        %1579 = vmatpush.msra.mxu0 %v1553
        %1580 = vmatpush.msra.mxu0 %v1550
        %1581 = vmatpush.msra.mxu0 %v1547
        %1582 = vmatpush.msra.mxu0 %v1544
        %1583 = vmatpush.msra.mxu0 %v1541
        %1584 = vmatpush.msra.mxu0 %v1538
        %1585 = vmatpush.msra.mxu0 %v1535
        %1586 = vmatpush.msra.mxu0 %v1532
        %1587 = vmatpush.msra.mxu0 %v1529
        %1588 = vmatpush.msra.mxu0 %v1526
        %1589 = vmatpush.msra.mxu0 %v1523
        %1590 = vmatpush.msra.mxu0 %v1520
        %1591 = vmatpush.msra.mxu0 %v1517
        %1592 = vmatpush.msra.mxu0 %v1514
        %1593 = vmatpush.msra.mxu0 %v1511
        %1594 = vmatmul.f32.gmra.mxu0 %v1509
        %v1595 = vpop.f32.mrf.mxu0
        %v1596 = vadd.f32 0.0, %v1595
        %1597 = vdwg.mxu0
        %1598 = vmatpush.msra.mxu0 %v1557
        %1599 = vmatpush.msra.mxu0 %v1554
        %1600 = vmatpush.msra.mxu0 %v1551
        %1601 = vmatpush.msra.mxu0 %v1548
        %1602 = vmatpush.msra.mxu0 %v1545
        %1603 = vmatpush.msra.mxu0 %v1542
        %1604 = vmatpush.msra.mxu0 %v1539
        %1605 = vmatpush.msra.mxu0 %v1536
        %1606 = vmatpush.msra.mxu0 %v1533
        %1607 = vmatpush.msra.mxu0 %v1530
        %1608 = vmatpush.msra.mxu0 %v1527
        %1609 = vmatpush.msra.mxu0 %v1524
        %1610 = vmatpush.msra.mxu0 %v1521
        %1611 = vmatpush.msra.mxu0 %v1518
        %1612 = vmatpush.msra.mxu0 %v1515
        %1613 = vmatpush.msra.mxu0 %v1512
        %1614 = vmatmul.f32.gmra.mxu0 %v1509
        %v1615 = vpop.f32.mrf.mxu0
        %v1616 = vadd.f32 0.0, %v1615
        %1617 = vdwg.mxu0
        %v1618 = vmax.f32 %v1576, %v1596
        %v1619 = vmax.f32 %v1618, %v1616
        %v1620 = vsub.f32 %v1576, %v1619
        %v1621 = vmul.f32 %v1620, 1.442695
        %v1622 = vpow.pop %v1621
        %v1623 = vsub.f32 %v1596, %v1619
        %v1624 = vmul.f32 %v1623, 1.442695
        %v1625 = vpow.pop %v1624
        %v1626 = vsub.f32 %v1616, %v1619
        %v1627 = vmul.f32 %v1626, 1.442695
        %v1628 = vpow.pop %v1627
        %v1629 = vadd.f32 %v1622, %v1625
        %v1630 = vadd.f32 %v1629, %v1628
        %v1631 = vrcp.pop %v1630
        %v1632 = vmul.f32 %v1622, %v1631
        %v1633 = vmul.f32 %v1625, %v1631
        %v1634 = vmul.f32 %v1628, %v1631
        %v1635 = vperm.slane %v1632, 0
        %v1636 = vmul.f32 %v1635, %v1044
        %v1637 = vmul.f32 %v1635, %v1045
        %v1638 = vmul.f32 %v1635, %v1046
        %v1639 = vmul.f32 %v1635, %v1047
        %v1640 = vmul.f32 %v1635, %v1048
        %v1641 = vmul.f32 %v1635, %v1049
        %v1642 = vmul.f32 %v1635, %v1050
        %v1643 = vmul.f32 %v1635, %v1051
        %v1644 = vmul.f32 %v1635, %v1052
        %v1645 = vmul.f32 %v1635, %v1053
        %v1646 = vmul.f32 %v1635, %v1054
        %v1647 = vmul.f32 %v1635, %v1055
        %v1648 = vmul.f32 %v1635, %v1056
        %v1649 = vmul.f32 %v1635, %v1057
        %v1650 = vmul.f32 %v1635, %v1058
        %v1651 = vmul.f32 %v1635, %v1059
        %v1652 = vmul.f32 %v1635, %v1060
        %v1653 = vmul.f32 %v1635, %v1061
        %v1654 = vmul.f32 %v1635, %v1062
        %v1655 = vmul.f32 %v1635, %v1063
        %v1656 = vmul.f32 %v1635, %v1064
        %v1657 = vmul.f32 %v1635, %v1065
        %v1658 = vmul.f32 %v1635, %v1066
        %v1659 = vmul.f32 %v1635, %v1067
        %v1660 = vmul.f32 %v1635, %v1068
        %v1661 = vmul.f32 %v1635, %v1069
        %v1662 = vmul.f32 %v1635, %v1070
        %v1663 = vmul.f32 %v1635, %v1071
        %v1664 = vmul.f32 %v1635, %v1072
        %v1665 = vmul.f32 %v1635, %v1073
        %v1666 = vmul.f32 %v1635, %v1074
        %v1667 = vmul.f32 %v1635, %v1075
        %v1668 = vperm.slane %v1633, 0
        %v1669 = vmul.f32 %v1668, %v1332
        %v1670 = vmul.f32 %v1668, %v1333
        %v1671 = vmul.f32 %v1668, %v1334
        %v1672 = vmul.f32 %v1668, %v1335
        %v1673 = vmul.f32 %v1668, %v1336
        %v1674 = vmul.f32 %v1668, %v1337
        %v1675 = vmul.f32 %v1668, %v1338
        %v1676 = vmul.f32 %v1668, %v1339
        %v1677 = vmul.f32 %v1668, %v1340
        %v1678 = vmul.f32 %v1668, %v1341
        %v1679 = vmul.f32 %v1668, %v1342
        %v1680 = vmul.f32 %v1668, %v1343
        %v1681 = vmul.f32 %v1668, %v1344
        %v1682 = vmul.f32 %v1668, %v1345
        %v1683 = vmul.f32 %v1668, %v1346
        %v1684 = vmul.f32 %v1668, %v1347
        %v1685 = vmul.f32 %v1668, %v1348
        %v1686 = vmul.f32 %v1668, %v1349
        %v1687 = vmul.f32 %v1668, %v1350
        %v1688 = vmul.f32 %v1668, %v1351
        %v1689 = vmul.f32 %v1668, %v1352
        %v1690 = vmul.f32 %v1668, %v1353
        %v1691 = vmul.f32 %v1668, %v1354
        %v1692 = vmul.f32 %v1668, %v1355
        %v1693 = vmul.f32 %v1668, %v1356
        %v1694 = vmul.f32 %v1668, %v1357
        %v1695 = vmul.f32 %v1668, %v1358
        %v1696 = vmul.f32 %v1668, %v1359
        %v1697 = vmul.f32 %v1668, %v1360
        %v1698 = vmul.f32 %v1668, %v1361
        %v1699 = vmul.f32 %v1668, %v1362
        %v1700 = vmul.f32 %v1668, %v1363
        %v1701 = vadd.f32 %v1636, %v1669
        %v1702 = vadd.f32 %v1637, %v1670
        %v1703 = vadd.f32 %v1638, %v1671
        %v1704 = vadd.f32 %v1639, %v1672
        %v1705 = vadd.f32 %v1640, %v1673
        %v1706 = vadd.f32 %v1641, %v1674
        %v1707 = vadd.f32 %v1642, %v1675
        %v1708 = vadd.f32 %v1643, %v1676
        %v1709 = vadd.f32 %v1644, %v1677
        %v1710 = vadd.f32 %v1645, %v1678
        %v1711 = vadd.f32 %v1646, %v1679
        %v1712 = vadd.f32 %v1647, %v1680
        %v1713 = vadd.f32 %v1648, %v1681
        %v1714 = vadd.f32 %v1649, %v1682
        %v1715 = vadd.f32 %v1650, %v1683
        %v1716 = vadd.f32 %v1651, %v1684
        %v1717 = vadd.f32 %v1652, %v1685
        %v1718 = vadd.f32 %v1653, %v1686
        %v1719 = vadd.f32 %v1654, %v1687
        %v1720 = vadd.f32 %v1655, %v1688
        %v1721 = vadd.f32 %v1656, %v1689
        %v1722 = vadd.f32 %v1657, %v1690
        %v1723 = vadd.f32 %v1658, %v1691
        %v1724 = vadd.f32 %v1659, %v1692
        %v1725 = vadd.f32 %v1660, %v1693
        %v1726 = vadd.f32 %v1661, %v1694
        %v1727 = vadd.f32 %v1662, %v1695
        %v1728 = vadd.f32 %v1663, %v1696
        %v1729 = vadd.f32 %v1664, %v1697
        %v1730 = vadd.f32 %v1665, %v1698
        %v1731 = vadd.f32 %v1666, %v1699
        %v1732 = vadd.f32 %v1667, %v1700
        %v1733 = vperm.slane %v1634, 0
        %v1734 = vmul.f32 %v1733, %v681
        %v1735 = vmul.f32 %v1733, %v683
        %v1736 = vmul.f32 %v1733, %v686
        %v1737 = vmul.f32 %v1733, %v688
        %v1738 = vmul.f32 %v1733, %v691
        %v1739 = vmul.f32 %v1733, %v693
        %v1740 = vmul.f32 %v1733, %v696
        %v1741 = vmul.f32 %v1733, %v698
        %v1742 = vmul.f32 %v1733, %v701
        %v1743 = vmul.f32 %v1733, %v703
        %v1744 = vmul.f32 %v1733, %v706
        %v1745 = vmul.f32 %v1733, %v708
        %v1746 = vmul.f32 %v1733, %v711
        %v1747 = vmul.f32 %v1733, %v713
        %v1748 = vmul.f32 %v1733, %v716
        %v1749 = vmul.f32 %v1733, %v718
        %v1750 = vmul.f32 %v1733, %v721
        %v1751 = vmul.f32 %v1733, %v723
        %v1752 = vmul.f32 %v1733, %v726
        %v1753 = vmul.f32 %v1733, %v728
        %v1754 = vmul.f32 %v1733, %v731
        %v1755 = vmul.f32 %v1733, %v733
        %v1756 = vmul.f32 %v1733, %v736
        %v1757 = vmul.f32 %v1733, %v738
        %v1758 = vmul.f32 %v1733, %v741
        %v1759 = vmul.f32 %v1733, %v743
        %v1760 = vmul.f32 %v1733, %v746
        %v1761 = vmul.f32 %v1733, %v748
        %v1762 = vmul.f32 %v1733, %v751
        %v1763 = vmul.f32 %v1733, %v753
        %v1764 = vmul.f32 %v1733, %v756
        %v1765 = vmul.f32 %v1733, %v758
        %v1766 = vadd.f32 %v1701, %v1734
        %v1767 = vadd.f32 %v1702, %v1735
        %v1768 = vadd.f32 %v1703, %v1736
        %v1769 = vadd.f32 %v1704, %v1737
        %v1770 = vadd.f32 %v1705, %v1738
        %v1771 = vadd.f32 %v1706, %v1739
        %v1772 = vadd.f32 %v1707, %v1740
        %v1773 = vadd.f32 %v1708, %v1741
        %v1774 = vadd.f32 %v1709, %v1742
        %v1775 = vadd.f32 %v1710, %v1743
        %v1776 = vadd.f32 %v1711, %v1744
        %v1777 = vadd.f32 %v1712, %v1745
        %v1778 = vadd.f32 %v1713, %v1746
        %v1779 = vadd.f32 %v1714, %v1747
        %v1780 = vadd.f32 %v1715, %v1748
        %v1781 = vadd.f32 %v1716, %v1749
        %v1782 = vadd.f32 %v1717, %v1750
        %v1783 = vadd.f32 %v1718, %v1751
        %v1784 = vadd.f32 %v1719, %v1752
        %v1785 = vadd.f32 %v1720, %v1753
        %v1786 = vadd.f32 %v1721, %v1754
        %v1787 = vadd.f32 %v1722, %v1755
        %v1788 = vadd.f32 %v1723, %v1756
        %v1789 = vadd.f32 %v1724, %v1757
        %v1790 = vadd.f32 %v1725, %v1758
        %v1791 = vadd.f32 %v1726, %v1759
        %v1792 = vadd.f32 %v1727, %v1760
        %v1793 = vadd.f32 %v1728, %v1761
        %v1794 = vadd.f32 %v1729, %v1762
        %v1795 = vadd.f32 %v1730, %v1763
        %v1796 = vadd.f32 %v1731, %v1764
        %v1797 = vadd.f32 %v1732, %v1765
        %v1798 = vpack.c.bf16 %v1767, %v1766
        %v1799 = vpack.c.bf16 %v1769, %v1768
        %v1800 = vpack.c.bf16 %v1771, %v1770
        %v1801 = vpack.c.bf16 %v1773, %v1772
        %v1802 = vpack.c.bf16 %v1775, %v1774
        %v1803 = vpack.c.bf16 %v1777, %v1776
        %v1804 = vpack.c.bf16 %v1779, %v1778
        %v1805 = vpack.c.bf16 %v1781, %v1780
        %v1806 = vpack.c.bf16 %v1783, %v1782
        %v1807 = vpack.c.bf16 %v1785, %v1784
        %v1808 = vpack.c.bf16 %v1787, %v1786
        %v1809 = vpack.c.bf16 %v1789, %v1788
        %v1810 = vpack.c.bf16 %v1791, %v1790
        %v1811 = vpack.c.bf16 %v1793, %v1792
        %v1812 = vpack.c.bf16 %v1795, %v1794
        %v1813 = vpack.c.bf16 %v1797, %v1796
        %v1814 = vld [vmem:[%s5] sm:$0xf]
        %v1815 = vld [vmem:[%s5 + $0x4] sm:$0xf]
        %v1816 = vld [vmem:[%s5 + $0x8] sm:$0xf]
        %v1817 = vld [vmem:[%s5 + $0xc] sm:$0xf]
        %v1818 = vld [vmem:[%s5 + $0x10] sm:$0xf]
        %v1819 = vld [vmem:[%s5 + $0x14] sm:$0xf]
        %v1820 = vld [vmem:[%s5 + $0x18] sm:$0xf]
        %v1821 = vld [vmem:[%s5 + $0x1c] sm:$0xf]
        %v1822 = vld [vmem:[%s5 + $0x20] sm:$0xf]
        %v1823 = vld [vmem:[%s5 + $0x24] sm:$0xf]
        %v1824 = vld [vmem:[%s5 + $0x28] sm:$0xf]
        %v1825 = vld [vmem:[%s5 + $0x2c] sm:$0xf]
        %v1826 = vld [vmem:[%s5 + $0x30] sm:$0xf]
        %v1827 = vld [vmem:[%s5 + $0x34] sm:$0xf]
        %v1828 = vld [vmem:[%s5 + $0x38] sm:$0xf]
        %v1829 = vld [vmem:[%s5 + $0x3c] sm:$0xf]
        %v1830 = vld [vmem:[%s6] sm:$0x1]
        %v1832 = vperm.slane %v1830, 0
        %v1850 = vunpack.c.l.b16 %v1814
        %v1851 = vunpack.c.l.b16 %v1815
        %v1852 = vunpack.c.l.b16 %v1816
        %v1853 = vunpack.c.l.b16 %v1817
        %v1854 = vunpack.c.l.b16 %v1818
        %v1855 = vunpack.c.l.b16 %v1819
        %v1856 = vunpack.c.l.b16 %v1820
        %v1857 = vunpack.c.l.b16 %v1821
        %v1858 = vunpack.c.l.b16 %v1822
        %v1859 = vunpack.c.l.b16 %v1823
        %v1860 = vunpack.c.l.b16 %v1824
        %v1861 = vunpack.c.l.b16 %v1825
        %v1862 = vunpack.c.l.b16 %v1826
        %v1863 = vunpack.c.l.b16 %v1827
        %v1864 = vunpack.c.l.b16 %v1828
        %v1865 = vunpack.c.l.b16 %v1829
        %v1866 = vpack.c.b16 %v1851, %v1850
        %v1867 = vpack.c.b16 %v1853, %v1852
        %v1868 = vpack.c.b16 %v1855, %v1854
        %v1869 = vpack.c.b16 %v1857, %v1856
        %v1870 = vpack.c.b16 %v1859, %v1858
        %v1871 = vpack.c.b16 %v1861, %v1860
        %v1872 = vpack.c.b16 %v1863, %v1862
        %v1873 = vpack.c.b16 %v1865, %v1864
        %1882 = vmatpush.bf16.msra.mxu0 %v1873
        %1883 = vmatpush.bf16.msra.mxu0 %v1872
        %1884 = vmatpush.bf16.msra.mxu0 %v1871
        %1885 = vmatpush.bf16.msra.mxu0 %v1870
        %1886 = vmatpush.bf16.msra.mxu0 %v1869
        %1887 = vmatpush.bf16.msra.mxu0 %v1868
        %1888 = vmatpush.bf16.msra.mxu0 %v1867
        %1889 = vmatpush.bf16.msra.mxu0 %v1866
        %1890 = vmatmul.bf16.gmra.mxu0 %v1798
        %v1891 = vpop.f32.mrf.mxu0
        %v1892 = vadd.f32 %v1832, %v1891
        %v1893 = vpop.f32.mrf.mxu0
        %v1894 = vadd.f32 %v1832, %v1893
        %1895 = vmatmul.bf16.gmra.mxu0 %v1799
        %v1896 = vpop.f32.mrf.mxu0
        %v1897 = vadd.f32 %v1832, %v1896
        %v1898 = vpop.f32.mrf.mxu0
        %v1899 = vadd.f32 %v1832, %v1898
        %1900 = vmatmul.bf16.gmra.mxu0 %v1800
        %v1901 = vpop.f32.mrf.mxu0
        %v1902 = vadd.f32 %v1832, %v1901
        %v1903 = vpop.f32.mrf.mxu0
        %v1904 = vadd.f32 %v1832, %v1903
        %1905 = vmatmul.bf16.gmra.mxu0 %v1801
        %v1906 = vpop.f32.mrf.mxu0
        %v1907 = vadd.f32 %v1832, %v1906
        %v1908 = vpop.f32.mrf.mxu0
        %v1909 = vadd.f32 %v1832, %v1908
        %1910 = vmatmul.bf16.gmra.mxu0 %v1802
        %v1911 = vpop.f32.mrf.mxu0
        %v1912 = vadd.f32 %v1832, %v1911
        %v1913 = vpop.f32.mrf.mxu0
        %v1914 = vadd.f32 %v1832, %v1913
        %1915 = vmatmul.bf16.gmra.mxu0 %v1803
        %v1916 = vpop.f32.mrf.mxu0
        %v1917 = vadd.f32 %v1832, %v1916
        %v1918 = vpop.f32.mrf.mxu0
        %v1919 = vadd.f32 %v1832, %v1918
        %1920 = vmatmul.bf16.gmra.mxu0 %v1804
        %v1921 = vpop.f32.mrf.mxu0
        %v1922 = vadd.f32 %v1832, %v1921
        %v1923 = vpop.f32.mrf.mxu0
        %v1924 = vadd.f32 %v1832, %v1923
        %1925 = vmatmul.bf16.gmra.mxu0 %v1805
        %v1926 = vpop.f32.mrf.mxu0
        %v1927 = vadd.f32 %v1832, %v1926
        %v1928 = vpop.f32.mrf.mxu0
        %v1929 = vadd.f32 %v1832, %v1928
        %1930 = vmatmul.bf16.gmra.mxu0 %v1806
        %v1931 = vpop.f32.mrf.mxu0
        %v1932 = vadd.f32 %v1832, %v1931
        %v1933 = vpop.f32.mrf.mxu0
        %v1934 = vadd.f32 %v1832, %v1933
        %1935 = vmatmul.bf16.gmra.mxu0 %v1807
        %v1936 = vpop.f32.mrf.mxu0
        %v1937 = vadd.f32 %v1832, %v1936
        %v1938 = vpop.f32.mrf.mxu0
        %v1939 = vadd.f32 %v1832, %v1938
        %1940 = vmatmul.bf16.gmra.mxu0 %v1808
        %v1941 = vpop.f32.mrf.mxu0
        %v1942 = vadd.f32 %v1832, %v1941
        %v1943 = vpop.f32.mrf.mxu0
        %v1944 = vadd.f32 %v1832, %v1943
        %1945 = vmatmul.bf16.gmra.mxu0 %v1809
        %v1946 = vpop.f32.mrf.mxu0
        %v1947 = vadd.f32 %v1832, %v1946
        %v1948 = vpop.f32.mrf.mxu0
        %v1949 = vadd.f32 %v1832, %v1948
        %1950 = vmatmul.bf16.gmra.mxu0 %v1810
        %v1951 = vpop.f32.mrf.mxu0
        %v1952 = vadd.f32 %v1832, %v1951
        %v1953 = vpop.f32.mrf.mxu0
        %v1954 = vadd.f32 %v1832, %v1953
        %1955 = vmatmul.bf16.gmra.mxu0 %v1811
        %v1956 = vpop.f32.mrf.mxu0
        %v1957 = vadd.f32 %v1832, %v1956
        %v1958 = vpop.f32.mrf.mxu0
        %v1959 = vadd.f32 %v1832, %v1958
        %1960 = vmatmul.bf16.gmra.mxu0 %v1812
        %v1961 = vpop.f32.mrf.mxu0
        %v1962 = vadd.f32 %v1832, %v1961
        %v1963 = vpop.f32.mrf.mxu0
        %v1964 = vadd.f32 %v1832, %v1963
        %1965 = vmatmul.bf16.gmra.mxu0 %v1813
        %v1966 = vpop.f32.mrf.mxu0
        %v1967 = vadd.f32 %v1832, %v1966
        %v1968 = vpop.f32.mrf.mxu0
        %v1969 = vadd.f32 %v1832, %v1968
        %1970 = vdwg.mxu0
        %1971 = vst [vmem:[%s271] sm:$0xff] %v1892
        %1972 = vst [vmem:[%s271 + $0x8] sm:$0xff] %v1894
        %1973 = vst [vmem:[%s271 + $0x10] sm:$0xff] %v1897
        %1974 = vst [vmem:[%s271 + $0x18] sm:$0xff] %v1899
        %1975 = vst [vmem:[%s271 + $0x20] sm:$0xff] %v1902
        %1976 = vst [vmem:[%s271 + $0x28] sm:$0xff] %v1904
        %1977 = vst [vmem:[%s271 + $0x30] sm:$0xff] %v1907
        %1978 = vst [vmem:[%s271 + $0x38] sm:$0xff] %v1909
        %1979 = vst [vmem:[%s271 + $0x40] sm:$0xff] %v1912
        %1980 = vst [vmem:[%s271 + $0x48] sm:$0xff] %v1914
        %1981 = vst [vmem:[%s271 + $0x50] sm:$0xff] %v1917
        %1982 = vst [vmem:[%s271 + $0x58] sm:$0xff] %v1919
        %1983 = vst [vmem:[%s271 + $0x60] sm:$0xff] %v1922
        %1984 = vst [vmem:[%s271 + $0x68] sm:$0xff] %v1924
        %1985 = vst [vmem:[%s271 + $0x70] sm:$0xff] %v1927
        %1986 = vst [vmem:[%s271 + $0x78] sm:$0xff] %v1929
        %1987 = vst [vmem:[%s271 + $0x80] sm:$0xff] %v1932
        %1988 = vst [vmem:[%s271 + $0x88] sm:$0xff] %v1934
        %1989 = vst [vmem:[%s271 + $0x90] sm:$0xff] %v1937
        %1990 = vst [vmem:[%s271 + $0x98] sm:$0xff] %v1939
        %1991 = vst [vmem:[%s271 + $0xa0] sm:$0xff] %v1942
        %1992 = vst [vmem:[%s271 + $0xa8] sm:$0xff] %v1944
        %1993 = vst [vmem:[%s271 + $0xb0] sm:$0xff] %v1947
        %1994 = vst [vmem:[%s271 + $0xb8] sm:$0xff] %v1949
        %1995 = vst [vmem:[%s271 + $0xc0] sm:$0xff] %v1952
        %1996 = vst [vmem:[%s271 + $0xc8] sm:$0xff] %v1954
        %1997 = vst [vmem:[%s271 + $0xd0] sm:$0xff] %v1957
        %1998 = vst [vmem:[%s271 + $0xd8] sm:$0xff] %v1959
        %1999 = vst [vmem:[%s271 + $0xe0] sm:$0xff] %v1962
        %2000 = vst [vmem:[%s271 + $0xe8] sm:$0xff] %v1964
        %2001 = vst [vmem:[%s271 + $0xf0] sm:$0xff] %v1967
        %2002 = vst [vmem:[%s271 + $0xf8] sm:$0xff] %v1969
        %s2003 = sand.u32 %s181, 1
        %s2004 = scalar_lea.sflag [#allocation3], %s2003
        %s2005 = sand.u32 %s181, 1
        %s2006 = smul.addr %s2005, 256
        %s2007 = scalar_lea.vmem [#allocation2], %s2006
        // Predicated region
        $region49: #{s2_attention_nhwc.1} parent=47 // pred_check
          %p2008 = pneg %p191
        $region50: #{s2_attention_nhwc.1} parent=47 // pred_check_branch
          %2010 = sbr.rel (%p2008) target = $region52
        $region51: #{s2_attention_nhwc.1} parent=47 // pred_region
          %2012 = vsyncadd %s2004, 0
          %s2013 = smul.addr %s21, 32
          %s2014 = smul.addr %s2013, 8
          %s2015 = scalar_lea.hbm %s7, %s2014
          %s2016 = sshll.u32 %s2007, 4
          %s2017 = int_to_ptr.vmem [resolvable:$true] %s2016
          %s2018 = sshll.u32 %s2015, 4
          %s2019 = int_to_ptr.hbm [resolvable:$true] %s2018
          %2024 = dma.vmem_to_hbm [thread:$0]  %s2017, 4096, %s2019, %s2004, 128, 128, 8
        $region52: #{s2_attention_nhwc.1} parent=47 // pred_fallthru
          _
      $region48: #{s2_attention_nhwc.1} parent=5 // pred_fallthru
        _
      %p2025 = scmp.le.s32.totalorder 2, %s16
      // Predicated region
      $region53: #{s2_attention_nhwc.1} parent=5 // pred_check
        %p2026 = pneg %p2025
      $region54: #{s2_attention_nhwc.1} parent=5 // pred_check_branch
        %2028 = sbr.rel (%p2026) target = $region56
      $region55: #{s2_attention_nhwc.1} parent=5 // pred_region
        %s2029 = ssub.s32 %s16, 2
        // Predicated region
        $region57: #{s2_attention_nhwc.1} parent=55 // pred_check
          %p2030 = pneg %p197
        $region58: #{s2_attention_nhwc.1} parent=55 // pred_check_branch
          %2032 = sbr.rel (%p2030) target = $region60
        $region59: #{s2_attention_nhwc.1} parent=55 // pred_region
          %s2033 = sand.u32 %s182, 1
          %s2034 = scalar_lea.sflag [#allocation3], %s2033
          %s2035 = sand.u32 %s182, 1
          %s2036 = smul.addr %s2035, 256
          %s2037 = scalar_lea.vmem [#allocation2], %s2036
          %2039 = dma.done %s2034, 4096
        $region60: #{s2_attention_nhwc.1} parent=55 // pred_fallthru
          _
      $region56: #{s2_attention_nhwc.1} parent=5 // pred_fallthru
        _
    $region6: #{s2_attention_nhwc.1} parent=1 // loop_footer
      %s20 = sadd.s32 1, %s16
    $region7: #{s2_attention_nhwc.1} parent=1 // loop_footer_branch
      %15 = sbr.rel target = $region3
    $region8: #{s2_attention_nhwc.1} parent=1 // loop_exit
      _
    %2040 = vsyncpa [#allocation3], 1
    %s2041 = scalar_lea.sflag [#allocation3], 1
    %2042 = vsyncpa %s2041, 1

</llo_original>
